<compile_context>
chip_gen: v7x
topology: tpu7x:2x2x1
jax: 0.10.0
libtpu: 0.0.40
codegen_flags: <defaults>
</compile_context>

<pallas_src>
import functools

import jax
import jax.numpy as jnp
from jax.experimental import pallas as pl
from jax.experimental.pallas import tpu as pltpu


# ----------------------------------------------------------------------------
# Fused kernel: conv0 + LeakyReLU -> conv1 + LeakyReLU -> final conv
# One grid step per batch element; activations live in vregs / VMEM scratch.
# ----------------------------------------------------------------------------
def _fused_head_kernel(x_ref, mask_ref,
                       w0_ref, b0_ref, w1_ref, b1_ref, wf_ref, bf_ref,
                       o_ref,
                       p0_ref, p1_ref, p2_ref,
                       *, Wp):
    """Layout: channels on sublanes, flattened zero-padded spatial (Hp*Wp,
    lane-padded to a multiple of 128) on lanes.  A 3x3 tap at offset (dy, dx)
    is a static roll of the flat padded slab by (dy-1)*Wp + (dx-1)."""
    mask = mask_ref[...]            # (1, Sp) f32: 1.0 on interior pixels, 0.0 on halo/pad
    x = x_ref[0]                    # (cin_pad, Sp) f32, zero halo + zero channel pad

    def conv3x3(src, patch_ref, w_ref, b_ref, leaky):
        cin = src.shape[0]
        sp = src.shape[1]
        # Build the im2col slab: 9 lane-rolled copies of src stacked on sublanes.
        for k in range(9):
            dy, dx = k // 3, k % 3
            off = (dy - 1) * Wp + (dx - 1)          # static tap offset (flat coords)
            if off == 0:
                shifted = src
            else:
                shifted = pltpu.roll(src, shift=(-off) % sp, axis=1)
            patch_ref[k * cin:(k + 1) * cin, :] = shifted.astype(patch_ref.dtype)
        # One MXU matmul per layer: (Cout, 9*Cin)bf16 @ (9*Cin, Sp)bf16 -> f32.
        out = jnp.dot(w_ref[...], patch_ref[...],
                      preferred_element_type=jnp.float32)
        out = out + b_ref[...]                       # (Cout, 1) broadcast over lanes
        if leaky:
            out = jnp.where(out > 0, out, 0.1 * out)  # LeakyReLU(0.1), f32
        return out

    # Interior mask re-establishes the zero halo for the next layer's taps.
    a0 = conv3x3(x, p0_ref, w0_ref, b0_ref, leaky=True) * mask     # (32, Sp)
    a1 = conv3x3(a0, p1_ref, w1_ref, b1_ref, leaky=True) * mask    # (16, Sp)
    unc = conv3x3(a1, p2_ref, wf_ref, bf_ref, leaky=False)         # (Cf, Sp)

    o_ref[0] = unc.astype(o_ref.dtype)               # lane-dense (Cf, Sp) store


# ----------------------------------------------------------------------------
# Wrapper: NCHW / HWIO in, NCHW out, single pallas_call.
# ----------------------------------------------------------------------------
def _uncertainty_head_pallas(x_nchw, w0, b0, w1, b1, wf, bf):
    N, Cin, H, W = x_nchw.shape
    Hp, Wp = H + 2, W + 2
    Sp = Hp * Wp
    Sp_pad = ((Sp + 127) // 128) * 128        # lane-dense flat spatial axis
    cin_pad = ((Cin + 7) // 8) * 8            # sublane-aligned input channels
    Cf = wf.shape[-1]

    # Pad the network input once: 1-pixel zero halo + channel pad, then flatten
    # spatial and pad the lane axis up to a multiple of 128.
    xp = jnp.pad(x_nchw.astype(jnp.float32),
                 ((0, 0), (0, cin_pad - Cin), (1, 1), (1, 1)))
    xp = jnp.pad(xp.reshape(N, cin_pad, Sp), ((0, 0), (0, 0), (0, Sp_pad - Sp)))

    # Interior mask in padded flat coordinates.
    mask2d = jnp.zeros((Hp, Wp), jnp.float32).at[1:-1, 1:-1].set(1.0)
    mask = jnp.pad(mask2d.reshape(1, Sp), ((0, 0), (0, Sp_pad - Sp)))

    # Weights: HWIO -> (Cout, 9*Cin) bf16 (MXU operands); biases (Cout, 1) f32.
    # TODO(synk): real PyTorch checkpoints are OIHW; permute (2,3,1,0) to HWIO
    #             before calling this wrapper.
    def prep_w(w_hwio, cin_p):
        ci, co = w_hwio.shape[2], w_hwio.shape[3]
        wpad = jnp.pad(w_hwio, ((0, 0), (0, 0), (0, cin_p - ci), (0, 0)))
        return wpad.reshape(9 * cin_p, co).T.astype(jnp.bfloat16)

    w0f = prep_w(w0, cin_pad)                 # (32, 9*cin_pad)
    w1f = prep_w(w1, 32)                      # (16, 288)
    wff = prep_w(wf, 16)                      # (Cf, 144)
    b0c = b0.reshape(32, 1).astype(jnp.float32)
    b1c = b1.reshape(16, 1).astype(jnp.float32)
    bfc = bf.reshape(Cf, 1).astype(jnp.float32)

    kernel = functools.partial(_fused_head_kernel, Wp=Wp)

    out_flat = pl.pallas_call(
        kernel,
        out_shape=jax.ShapeDtypeStruct((N, Cf, Sp_pad), jnp.float32),
        grid=(N,),
        in_specs=[
            pl.BlockSpec((1, cin_pad, Sp_pad), lambda n: (n, 0, 0)),
            pl.BlockSpec((1, Sp_pad), lambda n: (0, 0)),
            pl.BlockSpec((32, 9 * cin_pad), lambda n: (0, 0)),
            pl.BlockSpec((32, 1), lambda n: (0, 0)),
            pl.BlockSpec((16, 9 * 32), lambda n: (0, 0)),
            pl.BlockSpec((16, 1), lambda n: (0, 0)),
            pl.BlockSpec((Cf, 9 * 16), lambda n: (0, 0)),
            pl.BlockSpec((Cf, 1), lambda n: (0, 0)),
        ],
        out_specs=pl.BlockSpec((1, Cf, Sp_pad), lambda n: (n, 0, 0)),
        scratch_shapes=[
            pltpu.VMEM((9 * cin_pad, Sp_pad), jnp.bfloat16),   # im2col, layer 0
            pltpu.VMEM((9 * 32, Sp_pad), jnp.bfloat16),        # im2col, layer 1
            pltpu.VMEM((9 * 16, Sp_pad), jnp.bfloat16),        # im2col, final
        ],
        compiler_params=pltpu.CompilerParams(
            dimension_semantics=("parallel",)),
    )(xp, mask, w0f, b0c, w1f, b1c, wff, bfc)

    # Drop the lane pad and the 1-pixel halo -> NCHW.
    out = out_flat[:, :, :Sp].reshape(N, Cf, Hp, Wp)
    return out[:, :, 1:-1, 1:-1]


# ----------------------------------------------------------------------------
# Parameter construction (deterministic, synthetic — no checkpoint loading)
# ----------------------------------------------------------------------------
def init_params(key, in_channels, output_channels, estimate_small_variance):
    final_out = output_channels + 1 if estimate_small_variance else output_channels
    shapes = [
        (3, 3, in_channels, 32),   # conv_0 weight (HWIO)
        (32,),                     # conv_0 bias
        (3, 3, 32, 16),            # conv_1 weight
        (16,),                     # conv_1 bias
        (3, 3, 16, final_out),     # predict_uncertainty_final weight
        (final_out,),              # predict_uncertainty_final bias
    ]
    keys = jax.random.split(key, len(shapes))
    params = []
    for k, s in zip(keys, shapes):
        fan_in = 9 * s[2] if len(s) == 4 else 1
        params.append(jax.random.normal(k, s, jnp.float32) * (1.0 / jnp.sqrt(fan_in)))
    return params


# ----------------------------------------------------------------------------
# Full forward pass (matches PyTorch module semantics; I/O is NCHW)
# ----------------------------------------------------------------------------
def mixture_density_forward(
    x_nchw,
    params,
    *,
    output_channels=3,
    estimate_small_variance=False,
    output_all_channels_together=False,
):
    w0, b0, w1, b1, wf, bf = params
    unc = _uncertainty_head_pallas(x_nchw, w0, b0, w1, b1, wf, bf)  # (N, Cf, H, W)

    if output_all_channels_together:
        return unc
    elif estimate_small_variance:
        large_log_var = unc[:, 0:1]
        small_var = unc[:, 1:2]
        small_log_var = jax.nn.log_sigmoid(small_var)
        if output_channels == 1:
            proba_map = jnp.ones_like(large_log_var)
        else:
            proba_map = unc[:, 2:]
        return large_log_var, small_log_var, proba_map
    else:
        log_var_map = unc[:, 0:1]
        if output_channels == 1:
            proba_map = jnp.ones_like(log_var_map)
        else:
            proba_map = unc[:, 1:]
        return log_var_map, proba_map


if __name__ == "__main__":
    key = jax.random.PRNGKey(0)
    k_param, k_x = jax.random.split(key)

    # Small shapes consistent with the module: batch=2, in_channels=6, spatial=16x16.
    in_channels = 6
    output_channels = 3
    x = jax.random.normal(k_x, (2, in_channels, 16, 16), jnp.float32)  # NCHW

    params = init_params(k_param, in_channels, output_channels,
                         estimate_small_variance=False)

    log_var_map, proba_map = mixture_density_forward(
        x, params,
        output_channels=output_channels,
        estimate_small_variance=False,
        output_all_channels_together=False,
    )
    jax.block_until_ready((log_var_map, proba_map))

    assert log_var_map.shape == (2, 1, 16, 16)
    assert proba_map.shape == (2, output_channels - 1, 16, 16)

    # Numerical check against a pure-JAX/XLA reference.  Kernel uses bf16 MXU
    # operands with f32 accumulation -> relaxed absolute tolerance.
    w0, b0, w1, b1, wf, bf = params
    ref = x
    for wgt, bia, leaky in ((w0, b0, True), (w1, b1, True), (wf, bf, False)):
        ref = jax.lax.conv_general_dilated(
            ref, wgt, window_strides=(1, 1), padding=((1, 1), (1, 1)),
            dimension_numbers=("NCHW", "HWIO", "NCHW"))
        ref = ref + bia.reshape(1, -1, 1, 1)
        if leaky:
            ref = jnp.where(ref > 0, ref, 0.1 * ref)
    got = jnp.concatenate([log_var_map, proba_map], axis=1)
    max_err = float(jnp.max(jnp.abs(got - ref)))
    assert max_err < 1e-1, f"max abs error vs reference: {max_err}"

    print("KERNEL_OK")
</pallas_src>

<mosaic_0001>
module attributes {stable_mosaic.version = 11 : i64} {
  func.func @_fused_head_kernel(%arg0: i32, %arg1: memref<1x8x384xf32, #tpu.memory_space<vmem>>, %arg2: memref<1x384xf32, #tpu.memory_space<vmem>>, %arg3: memref<32x72xbf16, #tpu.memory_space<vmem>>, %arg4: memref<32x1xf32, #tpu.memory_space<vmem>>, %arg5: memref<16x288xbf16, #tpu.memory_space<vmem>>, %arg6: memref<16x1xf32, #tpu.memory_space<vmem>>, %arg7: memref<3x144xbf16, #tpu.memory_space<vmem>>, %arg8: memref<3x1xf32, #tpu.memory_space<vmem>>, %arg9: memref<1x3x384xf32, #tpu.memory_space<vmem>>, %arg10: memref<72x384xbf16, #tpu.memory_space<vmem>>, %arg11: memref<288x384xbf16, #tpu.memory_space<vmem>>, %arg12: memref<144x384xbf16, #tpu.memory_space<vmem>>) attributes {dimension_semantics = [#tpu.dimension_semantics<parallel>], iteration_bounds = array<i64: 2>, scalar_prefetch = 0 : i64, scratch_operands = 3 : i64, tpu.core_type = #tpu.core_type<tc>, window_params = [{transform_indices = @transform_0, window_bounds = array<i64: 1, 8, 384>}, {pipeline_mode = #tpu.pipeline_mode<synchronous>, transform_indices = @transform_1, window_bounds = array<i64: 1, 384>}, {pipeline_mode = #tpu.pipeline_mode<synchronous>, transform_indices = @transform_2, window_bounds = array<i64: 32, 72>}, {pipeline_mode = #tpu.pipeline_mode<synchronous>, transform_indices = @transform_3, window_bounds = array<i64: 32, 1>}, {pipeline_mode = #tpu.pipeline_mode<synchronous>, transform_indices = @transform_4, window_bounds = array<i64: 16, 288>}, {pipeline_mode = #tpu.pipeline_mode<synchronous>, transform_indices = @transform_5, window_bounds = array<i64: 16, 1>}, {pipeline_mode = #tpu.pipeline_mode<synchronous>, transform_indices = @transform_6, window_bounds = array<i64: 3, 144>}, {pipeline_mode = #tpu.pipeline_mode<synchronous>, transform_indices = @transform_7, window_bounds = array<i64: 3, 1>}, {transform_indices = @transform_8, window_bounds = array<i64: 1, 3, 384>}]} {
    %c0 = arith.constant 0 : index
    %c0_0 = arith.constant 0 : index
    %0 = vector.load %arg2[%c0, %c0_0] : memref<1x384xf32, #tpu.memory_space<vmem>>, vector<1x384xf32>
    %c0_1 = arith.constant 0 : index
    %c0_2 = arith.constant 0 : index
    %c0_3 = arith.constant 0 : index
    %1 = vector.load %arg1[%c0_1, %c0_2, %c0_3] : memref<1x8x384xf32, #tpu.memory_space<vmem>>, vector<1x8x384xf32>
    %2 = vector.shape_cast %1 : vector<1x8x384xf32> to vector<8x384xf32>
    %c19_i32 = arith.constant 19 : i32
    %3 = tpu.dynamic_rotate %2 by %c19_i32 dim 1 : vector<8x384xf32>, i32 -> vector<8x384xf32>
    %4 = arith.truncf %3 : vector<8x384xf32> to vector<8x384xbf16>
    %c0_4 = arith.constant 0 : index
    %c0_5 = arith.constant 0 : index
    %5 = vector.load %arg10[%c0_4, %c0_5] : memref<72x384xbf16, #tpu.memory_space<vmem>>, vector<8x384xbf16>
    tpu.vector_store %arg10[%c0_4, %c0_5], %4 {strides = array<i32>} : memref<72x384xbf16, #tpu.memory_space<vmem>>, vector<8x384xbf16>,
    %c18_i32 = arith.constant 18 : i32
    %6 = tpu.dynamic_rotate %2 by %c18_i32 dim 1 : vector<8x384xf32>, i32 -> vector<8x384xf32>
    %7 = arith.truncf %6 : vector<8x384xf32> to vector<8x384xbf16>
    %c8 = arith.constant 8 : index
    %c0_6 = arith.constant 0 : index
    %8 = vector.load %arg10[%c8, %c0_6] : memref<72x384xbf16, #tpu.memory_space<vmem>>, vector<8x384xbf16>
    tpu.vector_store %arg10[%c8, %c0_6], %7 {strides = array<i32>} : memref<72x384xbf16, #tpu.memory_space<vmem>>, vector<8x384xbf16>,
    %c17_i32 = arith.constant 17 : i32
    %9 = tpu.dynamic_rotate %2 by %c17_i32 dim 1 : vector<8x384xf32>, i32 -> vector<8x384xf32>
    %10 = arith.truncf %9 : vector<8x384xf32> to vector<8x384xbf16>
    %c16 = arith.constant 16 : index
    %c0_7 = arith.constant 0 : index
    %11 = vector.load %arg10[%c16, %c0_7] : memref<72x384xbf16, #tpu.memory_space<vmem>>, vector<8x384xbf16>
    tpu.vector_store %arg10[%c16, %c0_7], %10 {strides = array<i32>} : memref<72x384xbf16, #tpu.memory_space<vmem>>, vector<8x384xbf16>,
    %c1_i32 = arith.constant 1 : i32
    %12 = tpu.dynamic_rotate %2 by %c1_i32 dim 1 : vector<8x384xf32>, i32 -> vector<8x384xf32>
    %13 = arith.truncf %12 : vector<8x384xf32> to vector<8x384xbf16>
    %c24 = arith.constant 24 : index
    %c0_8 = arith.constant 0 : index
    %14 = vector.load %arg10[%c24, %c0_8] : memref<72x384xbf16, #tpu.memory_space<vmem>>, vector<8x384xbf16>
    tpu.vector_store %arg10[%c24, %c0_8], %13 {strides = array<i32>} : memref<72x384xbf16, #tpu.memory_space<vmem>>, vector<8x384xbf16>,
    %15 = arith.truncf %2 : vector<8x384xf32> to vector<8x384xbf16>
    %c32 = arith.constant 32 : index
    %c0_9 = arith.constant 0 : index
    %16 = vector.load %arg10[%c32, %c0_9] : memref<72x384xbf16, #tpu.memory_space<vmem>>, vector<8x384xbf16>
    tpu.vector_store %arg10[%c32, %c0_9], %15 {strides = array<i32>} : memref<72x384xbf16, #tpu.memory_space<vmem>>, vector<8x384xbf16>,
    %c383_i32 = arith.constant 383 : i32
    %17 = tpu.dynamic_rotate %2 by %c383_i32 dim 1 : vector<8x384xf32>, i32 -> vector<8x384xf32>
    %18 = arith.truncf %17 : vector<8x384xf32> to vector<8x384xbf16>
    %c40 = arith.constant 40 : index
    %c0_10 = arith.constant 0 : index
    %19 = vector.load %arg10[%c40, %c0_10] : memref<72x384xbf16, #tpu.memory_space<vmem>>, vector<8x384xbf16>
    tpu.vector_store %arg10[%c40, %c0_10], %18 {strides = array<i32>} : memref<72x384xbf16, #tpu.memory_space<vmem>>, vector<8x384xbf16>,
    %c367_i32 = arith.constant 367 : i32
    %20 = tpu.dynamic_rotate %2 by %c367_i32 dim 1 : vector<8x384xf32>, i32 -> vector<8x384xf32>
    %21 = arith.truncf %20 : vector<8x384xf32> to vector<8x384xbf16>
    %c48 = arith.constant 48 : index
    %c0_11 = arith.constant 0 : index
    %22 = vector.load %arg10[%c48, %c0_11] : memref<72x384xbf16, #tpu.memory_space<vmem>>, vector<8x384xbf16>
    tpu.vector_store %arg10[%c48, %c0_11], %21 {strides = array<i32>} : memref<72x384xbf16, #tpu.memory_space<vmem>>, vector<8x384xbf16>,
    %c366_i32 = arith.constant 366 : i32
    %23 = tpu.dynamic_rotate %2 by %c366_i32 dim 1 : vector<8x384xf32>, i32 -> vector<8x384xf32>
    %24 = arith.truncf %23 : vector<8x384xf32> to vector<8x384xbf16>
    %c56 = arith.constant 56 : index
    %c0_12 = arith.constant 0 : index
    %25 = vector.load %arg10[%c56, %c0_12] : memref<72x384xbf16, #tpu.memory_space<vmem>>, vector<8x384xbf16>
    tpu.vector_store %arg10[%c56, %c0_12], %24 {strides = array<i32>} : memref<72x384xbf16, #tpu.memory_space<vmem>>, vector<8x384xbf16>,
    %c365_i32 = arith.constant 365 : i32
    %26 = tpu.dynamic_rotate %2 by %c365_i32 dim 1 : vector<8x384xf32>, i32 -> vector<8x384xf32>
    %27 = arith.truncf %26 : vector<8x384xf32> to vector<8x384xbf16>
    %c64 = arith.constant 64 : index
    %c0_13 = arith.constant 0 : index
    %28 = vector.load %arg10[%c64, %c0_13] : memref<72x384xbf16, #tpu.memory_space<vmem>>, vector<8x384xbf16>
    tpu.vector_store %arg10[%c64, %c0_13], %27 {strides = array<i32>} : memref<72x384xbf16, #tpu.memory_space<vmem>>, vector<8x384xbf16>,
    %c0_14 = arith.constant 0 : index
    %c0_15 = arith.constant 0 : index
    %29 = vector.load %arg3[%c0_14, %c0_15] : memref<32x72xbf16, #tpu.memory_space<vmem>>, vector<32x72xbf16>
    %c0_16 = arith.constant 0 : index
    %c0_17 = arith.constant 0 : index
    %30 = vector.load %arg10[%c0_16, %c0_17] : memref<72x384xbf16, #tpu.memory_space<vmem>>, vector<72x384xbf16>
    %cst = arith.constant dense<0.000000e+00> : vector<32x384xf32>
    %31 = tpu.matmul %29, %30, %cst {dimension_numbers = #tpu.dot_dimension_numbers<[1], [0], [0], [1], [0, 0, 1, 1], [], []>} : vector<32x72xbf16>, vector<72x384xbf16>, vector<32x384xf32> -> vector<32x384xf32>
    %c0_18 = arith.constant 0 : index
    %c0_19 = arith.constant 0 : index
    %32 = vector.load %arg4[%c0_18, %c0_19] : memref<32x1xf32, #tpu.memory_space<vmem>>, vector<32x1xf32>
    %33 = vector.broadcast %32 : vector<32x1xf32> to vector<32x384xf32>
    %34 = arith.addf %31, %33 : vector<32x384xf32>
    %cst_20 = arith.constant 0.000000e+00 : f32
    %35 = vector.broadcast %cst_20 : f32 to vector<32x384xf32>
    %36 = arith.cmpf ogt, %34, %35 : vector<32x384xf32>
    %cst_21 = arith.constant 1.000000e-01 : f32
    %37 = vector.broadcast %cst_21 : f32 to vector<32x384xf32>
    %38 = arith.mulf %37, %34 : vector<32x384xf32>
    %39 = arith.select %36, %34, %38 : vector<32x384xi1>, vector<32x384xf32>
    %40 = vector.broadcast %0 : vector<1x384xf32> to vector<32x384xf32>
    %41 = arith.mulf %39, %40 : vector<32x384xf32>
    %c19_i32_22 = arith.constant 19 : i32
    %42 = tpu.dynamic_rotate %41 by %c19_i32_22 dim 1 : vector<32x384xf32>, i32 -> vector<32x384xf32>
    %43 = arith.truncf %42 : vector<32x384xf32> to vector<32x384xbf16>
    %c0_23 = arith.constant 0 : index
    %c0_24 = arith.constant 0 : index
    %44 = vector.load %arg11[%c0_23, %c0_24] : memref<288x384xbf16, #tpu.memory_space<vmem>>, vector<32x384xbf16>
    tpu.vector_store %arg11[%c0_23, %c0_24], %43 {strides = array<i32>} : memref<288x384xbf16, #tpu.memory_space<vmem>>, vector<32x384xbf16>,
    %c18_i32_25 = arith.constant 18 : i32
    %45 = tpu.dynamic_rotate %41 by %c18_i32_25 dim 1 : vector<32x384xf32>, i32 -> vector<32x384xf32>
    %46 = arith.truncf %45 : vector<32x384xf32> to vector<32x384xbf16>
    %c32_26 = arith.constant 32 : index
    %c0_27 = arith.constant 0 : index
    %47 = vector.load %arg11[%c32_26, %c0_27] : memref<288x384xbf16, #tpu.memory_space<vmem>>, vector<32x384xbf16>
    tpu.vector_store %arg11[%c32_26, %c0_27], %46 {strides = array<i32>} : memref<288x384xbf16, #tpu.memory_space<vmem>>, vector<32x384xbf16>,
    %c17_i32_28 = arith.constant 17 : i32
    %48 = tpu.dynamic_rotate %41 by %c17_i32_28 dim 1 : vector<32x384xf32>, i32 -> vector<32x384xf32>
    %49 = arith.truncf %48 : vector<32x384xf32> to vector<32x384xbf16>
    %c64_29 = arith.constant 64 : index
    %c0_30 = arith.constant 0 : index
    %50 = vector.load %arg11[%c64_29, %c0_30] : memref<288x384xbf16, #tpu.memory_space<vmem>>, vector<32x384xbf16>
    tpu.vector_store %arg11[%c64_29, %c0_30], %49 {strides = array<i32>} : memref<288x384xbf16, #tpu.memory_space<vmem>>, vector<32x384xbf16>,
    %c1_i32_31 = arith.constant 1 : i32
    %51 = tpu.dynamic_rotate %41 by %c1_i32_31 dim 1 : vector<32x384xf32>, i32 -> vector<32x384xf32>
    %52 = arith.truncf %51 : vector<32x384xf32> to vector<32x384xbf16>
    %c96 = arith.constant 96 : index
    %c0_32 = arith.constant 0 : index
    %53 = vector.load %arg11[%c96, %c0_32] : memref<288x384xbf16, #tpu.memory_space<vmem>>, vector<32x384xbf16>
    tpu.vector_store %arg11[%c96, %c0_32], %52 {strides = array<i32>} : memref<288x384xbf16, #tpu.memory_space<vmem>>, vector<32x384xbf16>,
    %54 = arith.truncf %41 : vector<32x384xf32> to vector<32x384xbf16>
    %c128 = arith.constant 128 : index
    %c0_33 = arith.constant 0 : index
    %55 = vector.load %arg11[%c128, %c0_33] : memref<288x384xbf16, #tpu.memory_space<vmem>>, vector<32x384xbf16>
    tpu.vector_store %arg11[%c128, %c0_33], %54 {strides = array<i32>} : memref<288x384xbf16, #tpu.memory_space<vmem>>, vector<32x384xbf16>,
    %c383_i32_34 = arith.constant 383 : i32
    %56 = tpu.dynamic_rotate %41 by %c383_i32_34 dim 1 : vector<32x384xf32>, i32 -> vector<32x384xf32>
    %57 = arith.truncf %56 : vector<32x384xf32> to vector<32x384xbf16>
    %c160 = arith.constant 160 : index
    %c0_35 = arith.constant 0 : index
    %58 = vector.load %arg11[%c160, %c0_35] : memref<288x384xbf16, #tpu.memory_space<vmem>>, vector<32x384xbf16>
    tpu.vector_store %arg11[%c160, %c0_35], %57 {strides = array<i32>} : memref<288x384xbf16, #tpu.memory_space<vmem>>, vector<32x384xbf16>,
    %c367_i32_36 = arith.constant 367 : i32
    %59 = tpu.dynamic_rotate %41 by %c367_i32_36 dim 1 : vector<32x384xf32>, i32 -> vector<32x384xf32>
    %60 = arith.truncf %59 : vector<32x384xf32> to vector<32x384xbf16>
    %c192 = arith.constant 192 : index
    %c0_37 = arith.constant 0 : index
    %61 = vector.load %arg11[%c192, %c0_37] : memref<288x384xbf16, #tpu.memory_space<vmem>>, vector<32x384xbf16>
    tpu.vector_store %arg11[%c192, %c0_37], %60 {strides = array<i32>} : memref<288x384xbf16, #tpu.memory_space<vmem>>, vector<32x384xbf16>,
    %c366_i32_38 = arith.constant 366 : i32
    %62 = tpu.dynamic_rotate %41 by %c366_i32_38 dim 1 : vector<32x384xf32>, i32 -> vector<32x384xf32>
    %63 = arith.truncf %62 : vector<32x384xf32> to vector<32x384xbf16>
    %c224 = arith.constant 224 : index
    %c0_39 = arith.constant 0 : index
    %64 = vector.load %arg11[%c224, %c0_39] : memref<288x384xbf16, #tpu.memory_space<vmem>>, vector<32x384xbf16>
    tpu.vector_store %arg11[%c224, %c0_39], %63 {strides = array<i32>} : memref<288x384xbf16, #tpu.memory_space<vmem>>, vector<32x384xbf16>,
    %c365_i32_40 = arith.constant 365 : i32
    %65 = tpu.dynamic_rotate %41 by %c365_i32_40 dim 1 : vector<32x384xf32>, i32 -> vector<32x384xf32>
    %66 = arith.truncf %65 : vector<32x384xf32> to vector<32x384xbf16>
    %c256 = arith.constant 256 : index
    %c0_41 = arith.constant 0 : index
    %67 = vector.load %arg11[%c256, %c0_41] : memref<288x384xbf16, #tpu.memory_space<vmem>>, vector<32x384xbf16>
    tpu.vector_store %arg11[%c256, %c0_41], %66 {strides = array<i32>} : memref<288x384xbf16, #tpu.memory_space<vmem>>, vector<32x384xbf16>,
    %c0_42 = arith.constant 0 : index
    %c0_43 = arith.constant 0 : index
    %68 = vector.load %arg5[%c0_42, %c0_43] : memref<16x288xbf16, #tpu.memory_space<vmem>>, vector<16x288xbf16>
    %c0_44 = arith.constant 0 : index
    %c0_45 = arith.constant 0 : index
    %69 = vector.load %arg11[%c0_44, %c0_45] : memref<288x384xbf16, #tpu.memory_space<vmem>>, vector<288x384xbf16>
    %cst_46 = arith.constant dense<0.000000e+00> : vector<16x384xf32>
    %70 = tpu.matmul %68, %69, %cst_46 {dimension_numbers = #tpu.dot_dimension_numbers<[1], [0], [0], [1], [0, 0, 1, 1], [], []>} : vector<16x288xbf16>, vector<288x384xbf16>, vector<16x384xf32> -> vector<16x384xf32>
    %c0_47 = arith.constant 0 : index
    %c0_48 = arith.constant 0 : index
    %71 = vector.load %arg6[%c0_47, %c0_48] : memref<16x1xf32, #tpu.memory_space<vmem>>, vector<16x1xf32>
    %72 = vector.broadcast %71 : vector<16x1xf32> to vector<16x384xf32>
    %73 = arith.addf %70, %72 : vector<16x384xf32>
    %cst_49 = arith.constant 0.000000e+00 : f32
    %74 = vector.broadcast %cst_49 : f32 to vector<16x384xf32>
    %75 = arith.cmpf ogt, %73, %74 : vector<16x384xf32>
    %cst_50 = arith.constant 1.000000e-01 : f32
    %76 = vector.broadcast %cst_50 : f32 to vector<16x384xf32>
    %77 = arith.mulf %76, %73 : vector<16x384xf32>
    %78 = arith.select %75, %73, %77 : vector<16x384xi1>, vector<16x384xf32>
    %79 = vector.broadcast %0 : vector<1x384xf32> to vector<16x384xf32>
    %80 = arith.mulf %78, %79 : vector<16x384xf32>
    %c19_i32_51 = arith.constant 19 : i32
    %81 = tpu.dynamic_rotate %80 by %c19_i32_51 dim 1 : vector<16x384xf32>, i32 -> vector<16x384xf32>
    %82 = arith.truncf %81 : vector<16x384xf32> to vector<16x384xbf16>
    %c0_52 = arith.constant 0 : index
    %c0_53 = arith.constant 0 : index
    %83 = vector.load %arg12[%c0_52, %c0_53] : memref<144x384xbf16, #tpu.memory_space<vmem>>, vector<16x384xbf16>
    tpu.vector_store %arg12[%c0_52, %c0_53], %82 {strides = array<i32>} : memref<144x384xbf16, #tpu.memory_space<vmem>>, vector<16x384xbf16>,
    %c18_i32_54 = arith.constant 18 : i32
    %84 = tpu.dynamic_rotate %80 by %c18_i32_54 dim 1 : vector<16x384xf32>, i32 -> vector<16x384xf32>
    %85 = arith.truncf %84 : vector<16x384xf32> to vector<16x384xbf16>
    %c16_55 = arith.constant 16 : index
    %c0_56 = arith.constant 0 : index
    %86 = vector.load %arg12[%c16_55, %c0_56] : memref<144x384xbf16, #tpu.memory_space<vmem>>, vector<16x384xbf16>
    tpu.vector_store %arg12[%c16_55, %c0_56], %85 {strides = array<i32>} : memref<144x384xbf16, #tpu.memory_space<vmem>>, vector<16x384xbf16>,
    %c17_i32_57 = arith.constant 17 : i32
    %87 = tpu.dynamic_rotate %80 by %c17_i32_57 dim 1 : vector<16x384xf32>, i32 -> vector<16x384xf32>
    %88 = arith.truncf %87 : vector<16x384xf32> to vector<16x384xbf16>
    %c32_58 = arith.constant 32 : index
    %c0_59 = arith.constant 0 : index
    %89 = vector.load %arg12[%c32_58, %c0_59] : memref<144x384xbf16, #tpu.memory_space<vmem>>, vector<16x384xbf16>
    tpu.vector_store %arg12[%c32_58, %c0_59], %88 {strides = array<i32>} : memref<144x384xbf16, #tpu.memory_space<vmem>>, vector<16x384xbf16>,
    %c1_i32_60 = arith.constant 1 : i32
    %90 = tpu.dynamic_rotate %80 by %c1_i32_60 dim 1 : vector<16x384xf32>, i32 -> vector<16x384xf32>
    %91 = arith.truncf %90 : vector<16x384xf32> to vector<16x384xbf16>
    %c48_61 = arith.constant 48 : index
    %c0_62 = arith.constant 0 : index
    %92 = vector.load %arg12[%c48_61, %c0_62] : memref<144x384xbf16, #tpu.memory_space<vmem>>, vector<16x384xbf16>
    tpu.vector_store %arg12[%c48_61, %c0_62], %91 {strides = array<i32>} : memref<144x384xbf16, #tpu.memory_space<vmem>>, vector<16x384xbf16>,
    %93 = arith.truncf %80 : vector<16x384xf32> to vector<16x384xbf16>
    %c64_63 = arith.constant 64 : index
    %c0_64 = arith.constant 0 : index
    %94 = vector.load %arg12[%c64_63, %c0_64] : memref<144x384xbf16, #tpu.memory_space<vmem>>, vector<16x384xbf16>
    tpu.vector_store %arg12[%c64_63, %c0_64], %93 {strides = array<i32>} : memref<144x384xbf16, #tpu.memory_space<vmem>>, vector<16x384xbf16>,
    %c383_i32_65 = arith.constant 383 : i32
    %95 = tpu.dynamic_rotate %80 by %c383_i32_65 dim 1 : vector<16x384xf32>, i32 -> vector<16x384xf32>
    %96 = arith.truncf %95 : vector<16x384xf32> to vector<16x384xbf16>
    %c80 = arith.constant 80 : index
    %c0_66 = arith.constant 0 : index
    %97 = vector.load %arg12[%c80, %c0_66] : memref<144x384xbf16, #tpu.memory_space<vmem>>, vector<16x384xbf16>
    tpu.vector_store %arg12[%c80, %c0_66], %96 {strides = array<i32>} : memref<144x384xbf16, #tpu.memory_space<vmem>>, vector<16x384xbf16>,
    %c367_i32_67 = arith.constant 367 : i32
    %98 = tpu.dynamic_rotate %80 by %c367_i32_67 dim 1 : vector<16x384xf32>, i32 -> vector<16x384xf32>
    %99 = arith.truncf %98 : vector<16x384xf32> to vector<16x384xbf16>
    %c96_68 = arith.constant 96 : index
    %c0_69 = arith.constant 0 : index
    %100 = vector.load %arg12[%c96_68, %c0_69] : memref<144x384xbf16, #tpu.memory_space<vmem>>, vector<16x384xbf16>
    tpu.vector_store %arg12[%c96_68, %c0_69], %99 {strides = array<i32>} : memref<144x384xbf16, #tpu.memory_space<vmem>>, vector<16x384xbf16>,
    %c366_i32_70 = arith.constant 366 : i32
    %101 = tpu.dynamic_rotate %80 by %c366_i32_70 dim 1 : vector<16x384xf32>, i32 -> vector<16x384xf32>
    %102 = arith.truncf %101 : vector<16x384xf32> to vector<16x384xbf16>
    %c112 = arith.constant 112 : index
    %c0_71 = arith.constant 0 : index
    %103 = vector.load %arg12[%c112, %c0_71] : memref<144x384xbf16, #tpu.memory_space<vmem>>, vector<16x384xbf16>
    tpu.vector_store %arg12[%c112, %c0_71], %102 {strides = array<i32>} : memref<144x384xbf16, #tpu.memory_space<vmem>>, vector<16x384xbf16>,
    %c365_i32_72 = arith.constant 365 : i32
    %104 = tpu.dynamic_rotate %80 by %c365_i32_72 dim 1 : vector<16x384xf32>, i32 -> vector<16x384xf32>
    %105 = arith.truncf %104 : vector<16x384xf32> to vector<16x384xbf16>
    %c128_73 = arith.constant 128 : index
    %c0_74 = arith.constant 0 : index
    %106 = vector.load %arg12[%c128_73, %c0_74] : memref<144x384xbf16, #tpu.memory_space<vmem>>, vector<16x384xbf16>
    tpu.vector_store %arg12[%c128_73, %c0_74], %105 {strides = array<i32>} : memref<144x384xbf16, #tpu.memory_space<vmem>>, vector<16x384xbf16>,
    %c0_75 = arith.constant 0 : index
    %c0_76 = arith.constant 0 : index
    %107 = vector.load %arg7[%c0_75, %c0_76] : memref<3x144xbf16, #tpu.memory_space<vmem>>, vector<3x144xbf16>
    %c0_77 = arith.constant 0 : index
    %c0_78 = arith.constant 0 : index
    %108 = vector.load %arg12[%c0_77, %c0_78] : memref<144x384xbf16, #tpu.memory_space<vmem>>, vector<144x384xbf16>
    %cst_79 = arith.constant dense<0.000000e+00> : vector<3x384xf32>
    %109 = tpu.matmul %107, %108, %cst_79 {dimension_numbers = #tpu.dot_dimension_numbers<[1], [0], [0], [1], [0, 0, 1, 1], [], []>} : vector<3x144xbf16>, vector<144x384xbf16>, vector<3x384xf32> -> vector<3x384xf32>
    %c0_80 = arith.constant 0 : index
    %c0_81 = arith.constant 0 : index
    %110 = vector.load %arg8[%c0_80, %c0_81] : memref<3x1xf32, #tpu.memory_space<vmem>>, vector<3x1xf32>
    %111 = vector.broadcast %110 : vector<3x1xf32> to vector<3x384xf32>
    %112 = arith.addf %109, %111 : vector<3x384xf32>
    %c0_82 = arith.constant 0 : index
    %c0_83 = arith.constant 0 : index
    %c0_84 = arith.constant 0 : index
    %113 = vector.load %arg9[%c0_82, %c0_83, %c0_84] : memref<1x3x384xf32, #tpu.memory_space<vmem>>, vector<1x3x384xf32>
    %114 = vector.shape_cast %113 : vector<1x3x384xf32> to vector<3x384xf32>
    %115 = vector.shape_cast %112 : vector<3x384xf32> to vector<1x3x384xf32>
    tpu.vector_store %arg9[%c0_82, %c0_83, %c0_84], %115 {strides = array<i32>} : memref<1x3x384xf32, #tpu.memory_space<vmem>>, vector<1x3x384xf32>,
    return
  }
  func.func @transform_0(%arg0: i32) -> (i32, i32, i32) {
    %c0_i32 = arith.constant 0 : i32
    %c0_i32_0 = arith.constant 0 : i32
    %c0_i32_1 = arith.constant 0 : i32
    return %arg0, %c0_i32, %c0_i32_0 : i32, i32, i32
  }
  func.func @transform_1(%arg0: i32) -> (i32, i32) {
    %c0_i32 = arith.constant 0 : i32
    %c0_i32_0 = arith.constant 0 : i32
    %c0_i32_1 = arith.constant 0 : i32
    return %c0_i32, %c0_i32_0 : i32, i32
  }
  func.func @transform_2(%arg0: i32) -> (i32, i32) {
    %c0_i32 = arith.constant 0 : i32
    %c0_i32_0 = arith.constant 0 : i32
    %c0_i32_1 = arith.constant 0 : i32
    return %c0_i32, %c0_i32_0 : i32, i32
  }
  func.func @transform_3(%arg0: i32) -> (i32, i32) {
    %c0_i32 = arith.constant 0 : i32
    %c0_i32_0 = arith.constant 0 : i32
    %c0_i32_1 = arith.constant 0 : i32
    return %c0_i32, %c0_i32_0 : i32, i32
  }
  func.func @transform_4(%arg0: i32) -> (i32, i32) {
    %c0_i32 = arith.constant 0 : i32
    %c0_i32_0 = arith.constant 0 : i32
    %c0_i32_1 = arith.constant 0 : i32
    return %c0_i32, %c0_i32_0 : i32, i32
  }
  func.func @transform_5(%arg0: i32) -> (i32, i32) {
    %c0_i32 = arith.constant 0 : i32
    %c0_i32_0 = arith.constant 0 : i32
    %c0_i32_1 = arith.constant 0 : i32
    return %c0_i32, %c0_i32_0 : i32, i32
  }
  func.func @transform_6(%arg0: i32) -> (i32, i32) {
    %c0_i32 = arith.constant 0 : i32
    %c0_i32_0 = arith.constant 0 : i32
    %c0_i32_1 = arith.constant 0 : i32
    return %c0_i32, %c0_i32_0 : i32, i32
  }
  func.func @transform_7(%arg0: i32) -> (i32, i32) {
    %c0_i32 = arith.constant 0 : i32
    %c0_i32_0 = arith.constant 0 : i32
    %c0_i32_1 = arith.constant 0 : i32
    return %c0_i32, %c0_i32_0 : i32, i32
  }
  func.func @transform_8(%arg0: i32) -> (i32, i32, i32) {
    %c0_i32 = arith.constant 0 : i32
    %c0_i32_0 = arith.constant 0 : i32
    %c0_i32_1 = arith.constant 0 : i32
    return %arg0, %c0_i32, %c0_i32_0 : i32, i32, i32
  }
}

</mosaic_0001>

<llo_original>
// kernel: tpu_custom_call.1
$region0: #{tpu_custom_call.1}
  #allocation0 [shape = 'u32[]', space=smem, size = 0x4, offset = 0x4, fixed_abs, tag = 'smem constant byte address 0x4 - core index']
  #allocation1 [shape = 'u32[144,128]{1,0:T(1,128)}', space=vmem, size = 0x12000, scoped, tag = 'internal scratch']
  #allocation2 [shape = 'bf16[72,384]{1,0:T(8,128)(2,1)}', space=vmem, size = 0xd800, scoped, tag = 'scratch operand']
  #allocation3 [shape = 'bf16[288,384]{1,0:T(16,128)(2,1)}', space=vmem, size = 0x36000, scoped, tag = 'scratch operand']
  #allocation4 [shape = 'bf16[144,384]{1,0:T(16,128)(2,1)}', space=vmem, size = 0x1b000, scoped, tag = 'scratch operand']
  %s0 = inlined_call_operand.vmem [shape: f32[2,8,384], index: 0, kind: input, shape index: {}]
  %s1 = inlined_call_operand.vmem [shape: f32[1,384], index: 1, kind: input, shape index: {}]
  %s2 = inlined_call_operand.hbm [shape: bf16[32,72], index: 2, kind: input, shape index: {}]
  %s3 = inlined_call_operand.vmem [shape: f32[32,1], index: 3, kind: input, shape index: {}]
  %s4 = inlined_call_operand.hbm [shape: bf16[16,288], index: 4, kind: input, shape index: {}]
  %s5 = inlined_call_operand.vmem [shape: f32[16,1], index: 5, kind: input, shape index: {}]
  %s6 = inlined_call_operand.vmem [shape: bf16[3,144], index: 6, kind: input, shape index: {}]
  %s7 = inlined_call_operand.vmem [shape: f32[3,1], index: 7, kind: input, shape index: {}]
  %s8 = inlined_call_operand.vmem [shape: f32[2,3,384], index: 8, kind: output, shape index: {}]
  %s9 = sld [smem:[#allocation0]]
  $region73: #{tpu_custom_call.1} parent=0
    _
  %s11 = ssub.s32 1, %s9
  %s12 = scalar_select 0, %s11, %s9
  $region1: #{tpu_custom_call.1} parent=0
    #allocation5 [shape = 'u8[8192]{0}', space=vmem, size = 0x2000, scoped, tag = 'input window, operand 2, single buffered']
    #allocation6 [shape = 's32[2]{0}', space=sflag, size = 0x8, scoped, tag = 'scoped memory for tpu_custom_call.1']
    #allocation7 [shape = 'u8[12288]{0}', space=vmem, size = 0x3000, scoped, tag = 'input window, operand 4, single buffered']
    #allocation8 [shape = 's32[1]{0}', space=sflag, size = 0x4, scoped, tag = 'scoped memory for tpu_custom_call.1']
    %13 = vsyncpa [#allocation6], 0
    %14 = vsyncpa [#allocation8], 0
    loop: start=0, step=1, limit=4
    $region2: #{tpu_custom_call.1} parent=1 // loop_pre_header
      _
    $region3: #{tpu_custom_call.1} parent=1 // loop_header
      %s16 = sphi 0, %s20
      %p17 = scmp.ge.s32.totalorder %s16, 4
      %s26 = sphi 0, %s28
      %s29 = sphi 0, %s26
      %s30 = sphi 0, %s29
      %s46 = sphi 0, %s30
      %s50 = sphi 0, %s50
      %s52 = sphi 0, %s50
      %s53 = sphi 0, %s52
      %s67 = sphi 0, %s53
      %s71 = sphi 0, %s71
      %s73 = sphi 0, %s71
      %s74 = sphi 0, %s73
      %s88 = sphi 0, %s74
      %s92 = sphi 0, %s92
      %s94 = sphi 0, %s92
      %s95 = sphi 0, %s94
      %s109 = sphi 0, %s95
      %s113 = sphi 0, %s113
      %s115 = sphi 0, %s113
      %s116 = sphi 0, %s115
      %s130 = sphi 0, %s116
      %s134 = sphi 0, %s134
      %s136 = sphi 0, %s134
      %s137 = sphi 0, %s136
      %s151 = sphi 0, %s137
      %s155 = sphi 0, %s155
      %s157 = sphi 0, %s155
      %s158 = sphi 0, %s157
      %s172 = sphi 0, %s158
      %s176 = sphi 0, %s176
      %s178 = sphi 0, %s176
      %s179 = sphi 0, %s178
      %s193 = sphi 0, %s179
      %s199 = sphi 0, %s201
      %s202 = sphi 0, %s199
      %s203 = sphi 0, %s202
      %s219 = sphi 0, %s203
    $region4: #{tpu_custom_call.1} parent=1 // loop_header_branch
      %19 = sbr.rel (%p17) target = $region8
    $region5: #{tpu_custom_call.1} parent=1 // loop_body
      %s21 = ssub.s32 %s16, 1
      %s22 = ssub.s32 %s16, 2
      %s23 = sadd.s32 %s16, 1
      %s24 = ssub.s32 %s16, %s23
      %p25 = scmp.eq.s32.totalorder %s24, 0
      %s27 = sadd.s32 %s26, 1
      %s28 = scalar_select %p25, %s26, %s27
      %p31 = pneg %p25
      %p32 = scmp.eq.s32.totalorder %s16, 1
      %p33 = por %p31, %p32
      %p34 = scmp.ne.s32.totalorder %s26, %s29
      %p35 = scmp.eq.s32.totalorder %s16, 0
      %p36 = por %p34, %p35
      %p37 = scmp.ne.s32.totalorder %s26, %s29
      %p38 = scmp.eq.s32.totalorder %s21, 1
      %p39 = por %p37, %p38
      %p40 = scmp.ne.s32.totalorder %s29, %s30
      %p41 = scmp.eq.s32.totalorder %s21, 0
      %p42 = por %p40, %p41
      %p43 = scmp.ne.s32.totalorder %s29, %s30
      %p44 = scmp.eq.s32.totalorder %s22, 1
      %p45 = por %p43, %p44
      %p47 = scmp.ne.s32.totalorder %s30, %s46
      %p48 = scmp.eq.s32.totalorder %s22, 0
      %p49 = por %p47, %p48
      %s51 = sadd.s32 %s50, 1
      %p54 = scmp.eq.s32.totalorder %s16, 1
      %p55 = scmp.ne.s32.totalorder %s50, %s52
      %p56 = scmp.eq.s32.totalorder %s16, 0
      %p57 = por %p55, %p56
      %p58 = scmp.ne.s32.totalorder %s50, %s52
      %p59 = scmp.eq.s32.totalorder %s21, 1
      %p60 = por %p58, %p59
      %p61 = scmp.ne.s32.totalorder %s52, %s53
      %p62 = scmp.eq.s32.totalorder %s21, 0
      %p63 = por %p61, %p62
      %p64 = scmp.ne.s32.totalorder %s52, %s53
      %p65 = scmp.eq.s32.totalorder %s22, 1
      %p66 = por %p64, %p65
      %p68 = scmp.ne.s32.totalorder %s53, %s67
      %p69 = scmp.eq.s32.totalorder %s22, 0
      %p70 = por %p68, %p69
      %s72 = sadd.s32 %s71, 1
      %p75 = scmp.eq.s32.totalorder %s16, 1
      %p76 = scmp.ne.s32.totalorder %s71, %s73
      %p77 = scmp.eq.s32.totalorder %s16, 0
      %p78 = por %p76, %p77
      %p79 = scmp.ne.s32.totalorder %s71, %s73
      %p80 = scmp.eq.s32.totalorder %s21, 1
      %p81 = por %p79, %p80
      %p82 = scmp.ne.s32.totalorder %s73, %s74
      %p83 = scmp.eq.s32.totalorder %s21, 0
      %p84 = por %p82, %p83
      %p85 = scmp.ne.s32.totalorder %s73, %s74
      %p86 = scmp.eq.s32.totalorder %s22, 1
      %p87 = por %p85, %p86
      %p89 = scmp.ne.s32.totalorder %s74, %s88
      %p90 = scmp.eq.s32.totalorder %s22, 0
      %p91 = por %p89, %p90
      %s93 = sadd.s32 %s92, 1
      %p96 = scmp.eq.s32.totalorder %s16, 1
      %p97 = scmp.ne.s32.totalorder %s92, %s94
      %p98 = scmp.eq.s32.totalorder %s16, 0
      %p99 = por %p97, %p98
      %p100 = scmp.ne.s32.totalorder %s92, %s94
      %p101 = scmp.eq.s32.totalorder %s21, 1
      %p102 = por %p100, %p101
      %p103 = scmp.ne.s32.totalorder %s94, %s95
      %p104 = scmp.eq.s32.totalorder %s21, 0
      %p105 = por %p103, %p104
      %p106 = scmp.ne.s32.totalorder %s94, %s95
      %p107 = scmp.eq.s32.totalorder %s22, 1
      %p108 = por %p106, %p107
      %p110 = scmp.ne.s32.totalorder %s95, %s109
      %p111 = scmp.eq.s32.totalorder %s22, 0
      %p112 = por %p110, %p111
      %s114 = sadd.s32 %s113, 1
      %p117 = scmp.eq.s32.totalorder %s16, 1
      %p118 = scmp.ne.s32.totalorder %s113, %s115
      %p119 = scmp.eq.s32.totalorder %s16, 0
      %p120 = por %p118, %p119
      %p121 = scmp.ne.s32.totalorder %s113, %s115
      %p122 = scmp.eq.s32.totalorder %s21, 1
      %p123 = por %p121, %p122
      %p124 = scmp.ne.s32.totalorder %s115, %s116
      %p125 = scmp.eq.s32.totalorder %s21, 0
      %p126 = por %p124, %p125
      %p127 = scmp.ne.s32.totalorder %s115, %s116
      %p128 = scmp.eq.s32.totalorder %s22, 1
      %p129 = por %p127, %p128
      %p131 = scmp.ne.s32.totalorder %s116, %s130
      %p132 = scmp.eq.s32.totalorder %s22, 0
      %p133 = por %p131, %p132
      %s135 = sadd.s32 %s134, 1
      %p138 = scmp.eq.s32.totalorder %s16, 1
      %p139 = scmp.ne.s32.totalorder %s134, %s136
      %p140 = scmp.eq.s32.totalorder %s16, 0
      %p141 = por %p139, %p140
      %p142 = scmp.ne.s32.totalorder %s134, %s136
      %p143 = scmp.eq.s32.totalorder %s21, 1
      %p144 = por %p142, %p143
      %p145 = scmp.ne.s32.totalorder %s136, %s137
      %p146 = scmp.eq.s32.totalorder %s21, 0
      %p147 = por %p145, %p146
      %p148 = scmp.ne.s32.totalorder %s136, %s137
      %p149 = scmp.eq.s32.totalorder %s22, 1
      %p150 = por %p148, %p149
      %p152 = scmp.ne.s32.totalorder %s137, %s151
      %p153 = scmp.eq.s32.totalorder %s22, 0
      %p154 = por %p152, %p153
      %s156 = sadd.s32 %s155, 1
      %p159 = scmp.eq.s32.totalorder %s16, 1
      %p160 = scmp.ne.s32.totalorder %s155, %s157
      %p161 = scmp.eq.s32.totalorder %s16, 0
      %p162 = por %p160, %p161
      %p163 = scmp.ne.s32.totalorder %s155, %s157
      %p164 = scmp.eq.s32.totalorder %s21, 1
      %p165 = por %p163, %p164
      %p166 = scmp.ne.s32.totalorder %s157, %s158
      %p167 = scmp.eq.s32.totalorder %s21, 0
      %p168 = por %p166, %p167
      %p169 = scmp.ne.s32.totalorder %s157, %s158
      %p170 = scmp.eq.s32.totalorder %s22, 1
      %p171 = por %p169, %p170
      %p173 = scmp.ne.s32.totalorder %s158, %s172
      %p174 = scmp.eq.s32.totalorder %s22, 0
      %p175 = por %p173, %p174
      %s177 = sadd.s32 %s176, 1
      %p180 = scmp.eq.s32.totalorder %s16, 1
      %p181 = scmp.ne.s32.totalorder %s176, %s178
      %p182 = scmp.eq.s32.totalorder %s16, 0
      %p183 = por %p181, %p182
      %p184 = scmp.ne.s32.totalorder %s176, %s178
      %p185 = scmp.eq.s32.totalorder %s21, 1
      %p186 = por %p184, %p185
      %p187 = scmp.ne.s32.totalorder %s178, %s179
      %p188 = scmp.eq.s32.totalorder %s21, 0
      %p189 = por %p187, %p188
      %p190 = scmp.ne.s32.totalorder %s178, %s179
      %p191 = scmp.eq.s32.totalorder %s22, 1
      %p192 = por %p190, %p191
      %p194 = scmp.ne.s32.totalorder %s179, %s193
      %p195 = scmp.eq.s32.totalorder %s22, 0
      %p196 = por %p194, %p195
      %s197 = ssub.s32 %s16, %s23
      %p198 = scmp.eq.s32.totalorder %s197, 0
      %s200 = sadd.s32 %s199, 1
      %s201 = scalar_select %p198, %s199, %s200
      %p204 = pneg %p198
      %p205 = scmp.eq.s32.totalorder %s16, 1
      %p206 = por %p204, %p205
      %p207 = scmp.ne.s32.totalorder %s199, %s202
      %p208 = scmp.eq.s32.totalorder %s16, 0
      %p209 = por %p207, %p208
      %p210 = scmp.ne.s32.totalorder %s199, %s202
      %p211 = scmp.eq.s32.totalorder %s21, 1
      %p212 = por %p210, %p211
      %p213 = scmp.ne.s32.totalorder %s202, %s203
      %p214 = scmp.eq.s32.totalorder %s21, 0
      %p215 = por %p213, %p214
      %p216 = scmp.ne.s32.totalorder %s202, %s203
      %p217 = scmp.eq.s32.totalorder %s22, 1
      %p218 = por %p216, %p217
      %p220 = scmp.ne.s32.totalorder %s203, %s219
      %p221 = scmp.eq.s32.totalorder %s22, 0
      %p222 = por %p220, %p221
      %p223 = scmp.le.s32.totalorder 1, %s16
      %p224 = scmp.lt.s32.totalorder %s16, 3
      %p225 = pnand %p223, %p224
      %p226 = pneg %p225
      // Predicated region
      $region9: #{tpu_custom_call.1} parent=5 // pred_check
        _
      $region10: #{tpu_custom_call.1} parent=5 // pred_check_branch
        %228 = sbr.rel (%p225) target = $region12
      $region11: #{tpu_custom_call.1} parent=5 // pred_region
        %s229 = ssub.s32 %s16, 1
        // Predicated region
        $region13: #{tpu_custom_call.1} parent=11 // pred_check
          %p230 = pneg %p63
        $region14: #{tpu_custom_call.1} parent=11 // pred_check_branch
          %232 = sbr.rel (%p230) target = $region16
        $region15: #{tpu_custom_call.1} parent=11 // pred_region
          _
        $region16: #{tpu_custom_call.1} parent=11 // pred_fallthru
          _
        // Predicated region
        $region17: #{tpu_custom_call.1} parent=11 // pred_check
          %p233 = pneg %p84
        $region18: #{tpu_custom_call.1} parent=11 // pred_check_branch
          %235 = sbr.rel (%p233) target = $region20
        $region19: #{tpu_custom_call.1} parent=11 // pred_region
          %s237 = ssub.s32 256, 256
          %238 = vsyncadd [#allocation6], %s237
          %s239 = sshll.u32 [#allocation5], 4
          %s240 = int_to_ptr.vmem [resolvable:$true] %s239
          %245 = dma.hbm_to_vmem [thread:$0]  %s2, 256, %s240, [#allocation6], 64, 64, 4
        $region20: #{tpu_custom_call.1} parent=11 // pred_fallthru
          _
        // Predicated region
        $region21: #{tpu_custom_call.1} parent=11 // pred_check
          %p246 = pneg %p105
        $region22: #{tpu_custom_call.1} parent=11 // pred_check_branch
          %248 = sbr.rel (%p246) target = $region24
        $region23: #{tpu_custom_call.1} parent=11 // pred_region
          _
        $region24: #{tpu_custom_call.1} parent=11 // pred_fallthru
          _
        // Predicated region
        $region25: #{tpu_custom_call.1} parent=11 // pred_check
          %p249 = pneg %p126
        $region26: #{tpu_custom_call.1} parent=11 // pred_check_branch
          %251 = sbr.rel (%p249) target = $region28
        $region27: #{tpu_custom_call.1} parent=11 // pred_region
          %s253 = ssub.s32 384, 384
          %254 = vsyncadd [#allocation8], %s253
          %s255 = sshll.u32 [#allocation7], 4
          %s256 = int_to_ptr.vmem [resolvable:$true] %s255
          %261 = dma.hbm_to_vmem [thread:$0]  %s4, 384, %s256, [#allocation8], 192, 192, 12
        $region28: #{tpu_custom_call.1} parent=11 // pred_fallthru
          _
        // Predicated region
        $region29: #{tpu_custom_call.1} parent=11 // pred_check
          %p262 = pneg %p147
        $region30: #{tpu_custom_call.1} parent=11 // pred_check_branch
          %264 = sbr.rel (%p262) target = $region32
        $region31: #{tpu_custom_call.1} parent=11 // pred_region
          _
        $region32: #{tpu_custom_call.1} parent=11 // pred_fallthru
          _
        // Predicated region
        $region33: #{tpu_custom_call.1} parent=11 // pred_check
          %p265 = pneg %p168
        $region34: #{tpu_custom_call.1} parent=11 // pred_check_branch
          %267 = sbr.rel (%p265) target = $region36
        $region35: #{tpu_custom_call.1} parent=11 // pred_region
          _
        $region36: #{tpu_custom_call.1} parent=11 // pred_fallthru
          _
        // Predicated region
        $region37: #{tpu_custom_call.1} parent=11 // pred_check
          %p268 = pneg %p189
        $region38: #{tpu_custom_call.1} parent=11 // pred_check_branch
          %270 = sbr.rel (%p268) target = $region40
        $region39: #{tpu_custom_call.1} parent=11 // pred_region
          _
        $region40: #{tpu_custom_call.1} parent=11 // pred_fallthru
          _
      $region12: #{tpu_custom_call.1} parent=5 // pred_fallthru
        _
      %p271 = scmp.lt.s32.totalorder %s16, 2
      // Predicated region
      $region41: #{tpu_custom_call.1} parent=5 // pred_check
        %p272 = pneg %p271
      $region42: #{tpu_custom_call.1} parent=5 // pred_check_branch
        %274 = sbr.rel (%p272) target = $region44
      $region43: #{tpu_custom_call.1} parent=5 // pred_region
        // Predicated region
        $region45: #{tpu_custom_call.1} parent=43 // pred_check
          %p275 = pneg %p36
        $region46: #{tpu_custom_call.1} parent=43 // pred_check_branch
          %277 = sbr.rel (%p275) target = $region48
        $region47: #{tpu_custom_call.1} parent=43 // pred_region
          %p278 = scmp.lt.s32.totalorder %s16, 1
          %s279 = scalar_select %p278, %s16, 1
          %s280 = smul.addr %s279, 3
          %s281 = smul.addr %s280, 8
          %s282 = scalar_lea.vmem %s0, %s281
        $region48: #{tpu_custom_call.1} parent=43 // pred_fallthru
          _
      $region44: #{tpu_custom_call.1} parent=5 // pred_fallthru
        _
      %p283 = scmp.le.s32.totalorder 1, %s16
      %p284 = scmp.lt.s32.totalorder %s16, 3
      %p285 = pnand %p283, %p284
      %p286 = pneg %p285
      // Predicated region
      $region49: #{tpu_custom_call.1} parent=5 // pred_check
        _
      $region50: #{tpu_custom_call.1} parent=5 // pred_check_branch
        %288 = sbr.rel (%p285) target = $region52
      $region51: #{tpu_custom_call.1} parent=5 // pred_region
        %s289 = ssub.s32 %s16, 1
        // Predicated region
        $region53: #{tpu_custom_call.1} parent=51 // pred_check
          %p290 = pneg %p84
        $region54: #{tpu_custom_call.1} parent=51 // pred_check_branch
          %292 = sbr.rel (%p290) target = $region56
        $region55: #{tpu_custom_call.1} parent=51 // pred_region
          %293 = dma.done [#allocation6], 256
        $region56: #{tpu_custom_call.1} parent=51 // pred_fallthru
          _
        // Predicated region
        $region57: #{tpu_custom_call.1} parent=51 // pred_check
          %p294 = pneg %p126
        $region58: #{tpu_custom_call.1} parent=51 // pred_check_branch
          %296 = sbr.rel (%p294) target = $region60
        $region59: #{tpu_custom_call.1} parent=51 // pred_region
          %297 = dma.done [#allocation8], 384
        $region60: #{tpu_custom_call.1} parent=51 // pred_fallthru
          _
        %p298 = scmp.lt.s32.totalorder %s21, 1
        %s299 = scalar_select %p298, %s21, 1
        %s300 = smul.addr %s299, 3
        %s301 = smul.addr %s300, 8
        %s302 = scalar_lea.vmem %s0, %s301
        %p303 = pneg %p42
        %p304 = pneg %p39
        %p305 = pneg %p63
        %p306 = pneg %p60
        %p307 = pneg %p84
        %p308 = pneg %p81
        %p309 = pneg %p105
        %p310 = pneg %p102
        %p311 = pneg %p126
        %p312 = pneg %p123
        %p313 = pneg %p147
        %p314 = pneg %p144
        %p315 = pneg %p168
        %p316 = pneg %p165
        %p317 = pneg %p189
        %p318 = pneg %p186
        %p319 = pneg %p215
        %p320 = pneg %p212
        %p321 = scmp.lt.s32.totalorder %s21, 1
        %s322 = scalar_select %p321, %s21, 1
        %s323 = smul.addr %s322, 3
        %s324 = smul.addr %s323, 4
        %s325 = scalar_lea.vmem %s8, %s324
        %p326 = scmp.lt.s32.totalorder %s21, 1
        %s327 = scalar_select %p326, %s21, 1
        %s328 = smul.addr %s327, 3
        %s329 = smul.addr %s328, 8
        %s330 = scalar_lea.vmem %s0, %s329
        %p331 = scmp.lt.s32.totalorder %s21, 1
        %s332 = scalar_select %p331, %s21, 1
        %s333 = smul.addr %s332, 3
        %s334 = smul.addr %s333, 4
        %s335 = scalar_lea.vmem %s8, %s334
        %v337 = vld [vmem:[%s1] sm:$0x7]
        %v338 = vld [vmem:[%s330] sm:$0xff]
        %v339 = vld [vmem:[%s330 + $0x8] sm:$0xff]
        %v340 = vld [vmem:[%s330 + $0x10] sm:$0xff]
        %341 = vrot.lane.b32.xlu0 %v338, 19
        %v342 = vpop.permute.xlu0 %341
        %343 = vrot.lane.b32.xlu0 %v339, 19
        %v344 = vpop.permute.xlu0 %343
        %345 = vrot.lane.b32.xlu0 %v340, 19
        %v346 = vpop.permute.xlu0 %345
        %v347 = vlaneseq
        %v348 = vand.u32 %v347, 127
        %vm349 = vcmp.lt.s32.totalorder %v348, 19
        %v350 = vsel %vm349, %v344, %v346
        %v351 = vsel %vm349, %v342, %v344
        %v352 = vsel %vm349, %v346, %v342
        %v353 = vpack.c.bf16 %v352, %v352
        %v354 = vpack.c.bf16 %v351, %v351
        %v355 = vpack.c.bf16 %v350, %v350
        %v359 = vunpack.c.l.b16 %v353
        %v360 = vunpack.c.l.b16 %v354
        %v361 = vunpack.c.l.b16 %v355
        %v362 = vpack.c.b16 %v360, %v359
        %v363 = vpack.c.b16 %v361, %v361
        %366 = vst [vmem:[#allocation2] sm:$0xff] %v362
        %367 = vst [vmem:[#allocation2 + $0x8] sm:$0xf] %v363
        %368 = vrot.lane.b32.xlu0 %v338, 18
        %v369 = vpop.permute.xlu0 %368
        %370 = vrot.lane.b32.xlu0 %v339, 18
        %v371 = vpop.permute.xlu0 %370
        %372 = vrot.lane.b32.xlu0 %v340, 18
        %v373 = vpop.permute.xlu0 %372
        %vm374 = vcmp.lt.s32.totalorder %v348, 18
        %v375 = vsel %vm374, %v371, %v373
        %v376 = vsel %vm374, %v369, %v371
        %v377 = vsel %vm374, %v373, %v369
        %v378 = vpack.c.bf16 %v377, %v377
        %v379 = vpack.c.bf16 %v376, %v376
        %v380 = vpack.c.bf16 %v375, %v375
        %v384 = vunpack.c.l.b16 %v378
        %v385 = vunpack.c.l.b16 %v379
        %v386 = vunpack.c.l.b16 %v380
        %v387 = vpack.c.b16 %v385, %v384
        %v388 = vpack.c.b16 %v386, %v386
        %391 = vst [vmem:[#allocation2 + $0xc] sm:$0xff] %v387
        %392 = vst [vmem:[#allocation2 + $0x14] sm:$0xf] %v388
        %393 = vrot.lane.b32.xlu0 %v338, 17
        %v394 = vpop.permute.xlu0 %393
        %395 = vrot.lane.b32.xlu0 %v339, 17
        %v396 = vpop.permute.xlu0 %395
        %397 = vrot.lane.b32.xlu0 %v340, 17
        %v398 = vpop.permute.xlu0 %397
        %vm399 = vcmp.lt.s32.totalorder %v348, 17
        %v400 = vsel %vm399, %v396, %v398
        %v401 = vsel %vm399, %v394, %v396
        %v402 = vsel %vm399, %v398, %v394
        %v403 = vpack.c.bf16 %v402, %v402
        %v404 = vpack.c.bf16 %v401, %v401
        %v405 = vpack.c.bf16 %v400, %v400
        %v409 = vunpack.c.l.b16 %v403
        %v410 = vunpack.c.l.b16 %v404
        %v411 = vunpack.c.l.b16 %v405
        %v412 = vpack.c.b16 %v410, %v409
        %v413 = vpack.c.b16 %v411, %v411
        %416 = vst [vmem:[#allocation2 + $0x18] sm:$0xff] %v412
        %417 = vst [vmem:[#allocation2 + $0x20] sm:$0xf] %v413
        %418 = vrot.lane.b32.xlu0 %v338, 1
        %v419 = vpop.permute.xlu0 %418
        %420 = vrot.lane.b32.xlu0 %v339, 1
        %v421 = vpop.permute.xlu0 %420
        %422 = vrot.lane.b32.xlu0 %v340, 1
        %v423 = vpop.permute.xlu0 %422
        %vm424 = vcmp.lt.s32.totalorder %v348, 1
        %v425 = vsel %vm424, %v421, %v423
        %v426 = vsel %vm424, %v419, %v421
        %v427 = vsel %vm424, %v423, %v419
        %v428 = vpack.c.bf16 %v427, %v427
        %v429 = vpack.c.bf16 %v426, %v426
        %v430 = vpack.c.bf16 %v425, %v425
        %v434 = vunpack.c.l.b16 %v428
        %v435 = vunpack.c.l.b16 %v429
        %v436 = vunpack.c.l.b16 %v430
        %v437 = vpack.c.b16 %v435, %v434
        %v438 = vpack.c.b16 %v436, %v436
        %441 = vst [vmem:[#allocation2 + $0x24] sm:$0xff] %v437
        %442 = vst [vmem:[#allocation2 + $0x2c] sm:$0xf] %v438
        %v443 = vpack.c.bf16 %v338, %v338
        %v444 = vpack.c.bf16 %v339, %v339
        %v445 = vpack.c.bf16 %v340, %v340
        %v449 = vunpack.c.l.b16 %v443
        %v450 = vunpack.c.l.b16 %v444
        %v451 = vunpack.c.l.b16 %v445
        %v452 = vpack.c.b16 %v450, %v449
        %v453 = vpack.c.b16 %v451, %v451
        %456 = vst [vmem:[#allocation2 + $0x30] sm:$0xff] %v452
        %457 = vst [vmem:[#allocation2 + $0x38] sm:$0xf] %v453
        %458 = vrot.lane.b32.xlu0 %v338, 127
        %v459 = vpop.permute.xlu0 %458
        %460 = vrot.lane.b32.xlu0 %v339, 127
        %v461 = vpop.permute.xlu0 %460
        %462 = vrot.lane.b32.xlu0 %v340, 127
        %v463 = vpop.permute.xlu0 %462
        %vm464 = vcmp.lt.s32.totalorder %v348, 127
        %v465 = vsel %vm464, %v461, %v463
        %v466 = vsel %vm464, %v459, %v461
        %v467 = vsel %vm464, %v463, %v459
        %v468 = vpack.c.bf16 %v466, %v466
        %v469 = vpack.c.bf16 %v465, %v465
        %v470 = vpack.c.bf16 %v467, %v467
        %v474 = vunpack.c.l.b16 %v468
        %v475 = vunpack.c.l.b16 %v469
        %v476 = vunpack.c.l.b16 %v470
        %v477 = vpack.c.b16 %v475, %v474
        %v478 = vpack.c.b16 %v476, %v476
        %481 = vst [vmem:[#allocation2 + $0x3c] sm:$0xff] %v477
        %482 = vst [vmem:[#allocation2 + $0x44] sm:$0xf] %v478
        %483 = vrot.lane.b32.xlu0 %v338, 111
        %v484 = vpop.permute.xlu0 %483
        %485 = vrot.lane.b32.xlu0 %v339, 111
        %v486 = vpop.permute.xlu0 %485
        %487 = vrot.lane.b32.xlu0 %v340, 111
        %v488 = vpop.permute.xlu0 %487
        %vm489 = vcmp.lt.s32.totalorder %v348, 111
        %v490 = vsel %vm489, %v486, %v488
        %v491 = vsel %vm489, %v484, %v486
        %v492 = vsel %vm489, %v488, %v484
        %v493 = vpack.c.bf16 %v491, %v491
        %v494 = vpack.c.bf16 %v490, %v490
        %v495 = vpack.c.bf16 %v492, %v492
        %v499 = vunpack.c.l.b16 %v493
        %v500 = vunpack.c.l.b16 %v494
        %v501 = vunpack.c.l.b16 %v495
        %v502 = vpack.c.b16 %v500, %v499
        %v503 = vpack.c.b16 %v501, %v501
        %506 = vst [vmem:[#allocation2 + $0x48] sm:$0xff] %v502
        %507 = vst [vmem:[#allocation2 + $0x50] sm:$0xf] %v503
        %508 = vrot.lane.b32.xlu0 %v338, 110
        %v509 = vpop.permute.xlu0 %508
        %510 = vrot.lane.b32.xlu0 %v339, 110
        %v511 = vpop.permute.xlu0 %510
        %512 = vrot.lane.b32.xlu0 %v340, 110
        %v513 = vpop.permute.xlu0 %512
        %vm514 = vcmp.lt.s32.totalorder %v348, 110
        %v515 = vsel %vm514, %v511, %v513
        %v516 = vsel %vm514, %v509, %v511
        %v517 = vsel %vm514, %v513, %v509
        %v518 = vpack.c.bf16 %v516, %v516
        %v519 = vpack.c.bf16 %v515, %v515
        %v520 = vpack.c.bf16 %v517, %v517
        %v524 = vunpack.c.l.b16 %v518
        %v525 = vunpack.c.l.b16 %v519
        %v526 = vunpack.c.l.b16 %v520
        %v527 = vpack.c.b16 %v525, %v524
        %v528 = vpack.c.b16 %v526, %v526
        %531 = vst [vmem:[#allocation2 + $0x54] sm:$0xff] %v527
        %532 = vst [vmem:[#allocation2 + $0x5c] sm:$0xf] %v528
        %533 = vrot.lane.b32.xlu0 %v338, 109
        %v534 = vpop.permute.xlu0 %533
        %535 = vrot.lane.b32.xlu0 %v339, 109
        %v536 = vpop.permute.xlu0 %535
        %537 = vrot.lane.b32.xlu0 %v340, 109
        %v538 = vpop.permute.xlu0 %537
        %vm539 = vcmp.lt.s32.totalorder %v348, 109
        %v540 = vsel %vm539, %v536, %v538
        %v541 = vsel %vm539, %v534, %v536
        %v542 = vsel %vm539, %v538, %v534
        %v543 = vpack.c.bf16 %v541, %v541
        %v544 = vpack.c.bf16 %v540, %v540
        %v545 = vpack.c.bf16 %v542, %v542
        %v549 = vunpack.c.l.b16 %v543
        %v550 = vunpack.c.l.b16 %v544
        %v551 = vunpack.c.l.b16 %v545
        %v552 = vpack.c.b16 %v550, %v549
        %v553 = vpack.c.b16 %v551, %v551
        %556 = vst [vmem:[#allocation2 + $0x60] sm:$0xff] %v552
        %557 = vst [vmem:[#allocation2 + $0x68] sm:$0xf] %v553
        %v558 = vld [vmem:[#allocation5] sm:$0xf]
        %v559 = vld [vmem:[#allocation5 + $0x4] sm:$0xf]
        %v560 = vld [vmem:[#allocation5 + $0x8] sm:$0xf]
        %v561 = vld [vmem:[#allocation5 + $0xc] sm:$0xf]
        %v562 = vld [vmem:[#allocation2] sm:$0xff]
        %v563 = vld [vmem:[#allocation2 + $0x8] sm:$0xf]
        %v564 = vld [vmem:[#allocation2 + $0xc] sm:$0xff]
        %v565 = vld [vmem:[#allocation2 + $0x14] sm:$0xf]
        %v566 = vld [vmem:[#allocation2 + $0x18] sm:$0xff]
        %v567 = vld [vmem:[#allocation2 + $0x20] sm:$0xf]
        %v568 = vld [vmem:[#allocation2 + $0x24] sm:$0xff]
        %v569 = vld [vmem:[#allocation2 + $0x2c] sm:$0xf]
        %v570 = vld [vmem:[#allocation2 + $0x30] sm:$0xff]
        %v571 = vld [vmem:[#allocation2 + $0x38] sm:$0xf]
        %v572 = vld [vmem:[#allocation2 + $0x3c] sm:$0xff]
        %v573 = vld [vmem:[#allocation2 + $0x44] sm:$0xf]
        %v574 = vld [vmem:[#allocation2 + $0x48] sm:$0xff]
        %v575 = vld [vmem:[#allocation2 + $0x50] sm:$0xf]
        %v576 = vld [vmem:[#allocation2 + $0x54] sm:$0xff]
        %v577 = vld [vmem:[#allocation2 + $0x5c] sm:$0xf]
        %v578 = vld [vmem:[#allocation2 + $0x60] sm:$0xff]
        %v579 = vld [vmem:[#allocation2 + $0x68] sm:$0xf]
        %v580 = vld [vmem:[%s3] sm:$0xff]
        %v581 = vld [vmem:[%s3 + $0x8] sm:$0xff]
        %v582 = vld [vmem:[%s3 + $0x10] sm:$0xff]
        %v583 = vld [vmem:[%s3 + $0x18] sm:$0xff]
        %585 = vset.pattern.permute.xlu0 0
        %586 = vperm.xlu0 %585, %v580
        %v587 = vpop.permute.xlu0 %586
        %590 = vset.pattern.permute.xlu0 0
        %591 = vperm.xlu0 %590, %v581
        %v592 = vpop.permute.xlu0 %591
        %595 = vset.pattern.permute.xlu0 0
        %596 = vperm.xlu0 %595, %v582
        %v597 = vpop.permute.xlu0 %596
        %600 = vset.pattern.permute.xlu0 0
        %601 = vperm.xlu0 %600, %v583
        %v602 = vpop.permute.xlu0 %601
        %v608 = vunpack.c.l.b16 %v558
        %v609 = vunpack.c.l.b16 %v559
        %v610 = vunpack.c.l.b16 %v560
        %v611 = vunpack.c.l.b16 %v561
        %v612 = vpack.c.b16 %v609, %v608
        %v613 = vpack.c.b16 %v611, %v610
        %v632 = vunpack.c.l.b16 %v562
        %v633 = vunpack.c.h.b16 %v562
        %v634 = vunpack.c.l.b16 %v563
        %v635 = vunpack.c.l.b16 %v564
        %v636 = vunpack.c.h.b16 %v564
        %v637 = vunpack.c.l.b16 %v565
        %v638 = vunpack.c.l.b16 %v566
        %v639 = vunpack.c.h.b16 %v566
        %v640 = vunpack.c.l.b16 %v567
        %v641 = vunpack.c.l.b16 %v568
        %v642 = vunpack.c.h.b16 %v568
        %v643 = vunpack.c.l.b16 %v569
        %v644 = vunpack.c.l.b16 %v570
        %v645 = vunpack.c.h.b16 %v570
        %v646 = vunpack.c.l.b16 %v571
        %v647 = vunpack.c.l.b16 %v572
        %v648 = vunpack.c.h.b16 %v572
        %v649 = vunpack.c.l.b16 %v573
        %v650 = vunpack.c.l.b16 %v574
        %v651 = vunpack.c.h.b16 %v574
        %v652 = vunpack.c.l.b16 %v575
        %v653 = vunpack.c.l.b16 %v576
        %v654 = vunpack.c.h.b16 %v576
        %v655 = vunpack.c.l.b16 %v577
        %v656 = vunpack.c.l.b16 %v578
        %v657 = vunpack.c.h.b16 %v578
        %v658 = vunpack.c.l.b16 %v579
        %v659 = vpack.c.b16 %v635, %v632
        %v660 = vpack.c.b16 %v636, %v633
        %v661 = vpack.c.b16 %v637, %v634
        %v662 = vpack.c.b16 %v641, %v638
        %v663 = vpack.c.b16 %v642, %v639
        %v664 = vpack.c.b16 %v643, %v640
        %v665 = vpack.c.b16 %v647, %v644
        %v666 = vpack.c.b16 %v648, %v645
        %v667 = vpack.c.b16 %v649, %v646
        %v668 = vpack.c.b16 %v653, %v650
        %v669 = vpack.c.b16 %v654, %v651
        %v670 = vpack.c.b16 %v655, %v652
        %v671 = vpack.c.b16 %v656, %v656
        %v672 = vpack.c.b16 %v657, %v657
        %v673 = vpack.c.b16 %v658, %v658
        %vm686 = vcmask 588800
        %v688 = vsel %vm686, %v612, 0
        %v691 = vsel %vm686, %v613, 0
        %vm693 = vcmask 1043456
        %v695 = vsel %vm693, %v671, 0
        %v698 = vsel %vm693, %v672, 0
        %v701 = vsel %vm693, %v673, 0
        %703 = vmatprep.subr.bf16.mxu0 %v660
        %704 = vmatpush1.bf16.msra.mxu0 %v659
        %705 = vmatprep.subr.bf16.mxu0 %v663
        %706 = vmatpush1.bf16.msra.mxu0 %v662
        %707 = vmatprep.subr.bf16.mxu0 %v666
        %708 = vmatpush1.bf16.msra.mxu0 %v665
        %709 = vmatprep.subr.bf16.mxu0 %v669
        %710 = vmatpush1.bf16.msra.mxu0 %v668
        %711 = vmatprep.subr.bf16.mxu0 %v698
        %712 = vmatpush1.bf16.msra.mxu0 %v695
        %713 = vmatprep.subr.bf16.mxu0 0
        %714 = vmatpush1.bf16.msra.mxu0 0
        %715 = vmatprep.subr.bf16.mxu0 0
        %716 = vmatpush1.bf16.msra.mxu0 0
        %717 = vmatprep.subr.bf16.mxu0 0
        %718 = vmatpush1.bf16.msra.mxu0 0
        %719 = vmatprep.subr.bf16.mxu0 0
        %720 = vmatpush1.bf16.msra.mxu0 0
        %721 = vmatprep.subr.bf16.mxu0 0
        %722 = vmatpush1.bf16.msra.mxu0 0
        %723 = vmatprep.subr.bf16.mxu0 0
        %724 = vmatpush1.bf16.msra.mxu0 0
        %725 = vmatprep.subr.bf16.mxu0 0
        %726 = vmatpush1.bf16.msra.mxu0 0
        %727 = vmatprep.subr.bf16.mxu0 0
        %728 = vmatpush1.bf16.msra.mxu0 0
        %729 = vmatprep.subr.bf16.mxu0 0
        %730 = vmatpush1.bf16.msra.mxu0 0
        %731 = vmatprep.subr.bf16.mxu0 0
        %732 = vmatpush1.bf16.msra.mxu0 0
        %733 = vmatprep.subr.bf16.mxu0 0
        %734 = vmatpush1.bf16.msra.mxu0 0
        %735 = vmatprep.mubr.bf16.mxu0 0
        %736 = vmatmul.mubr.bf16.gmra.mrb[0].mxu0 %v688
        %v737 = vpop.f32.mrb[0].mxu0
        %v738 = vadd.f32 %v587, %v737
        %v739 = vpop.f32.mrb[0].mxu0
        %v740 = vadd.f32 %v587, %v739
        %v741 = vpop.f32.mrb[0].mxu0
        %v742 = vadd.f32 %v592, %v741
        %v743 = vpop.f32.mrb[0].mxu0
        %v744 = vadd.f32 %v592, %v743
        %745 = vmatprep.mubr.bf16.mxu0 0
        %746 = vmatmul.mubr.bf16.gmra.mrb[0].mxu0 %v691
        %v747 = vpop.f32.mrb[0].mxu0
        %v748 = vadd.f32 %v597, %v747
        %v749 = vpop.f32.mrb[0].mxu0
        %v750 = vadd.f32 %v597, %v749
        %v751 = vpop.f32.mrb[0].mxu0
        %v752 = vadd.f32 %v602, %v751
        %v753 = vpop.f32.mrb[0].mxu0
        %v754 = vadd.f32 %v602, %v753
        %755 = vdwg.mxu0
        %756 = vmatprep.subr.bf16.mxu0 0
        %757 = vmatpush1.bf16.msra.mxu0 %v661
        %758 = vmatprep.subr.bf16.mxu0 0
        %759 = vmatpush1.bf16.msra.mxu0 %v664
        %760 = vmatprep.subr.bf16.mxu0 0
        %761 = vmatpush1.bf16.msra.mxu0 %v667
        %762 = vmatprep.subr.bf16.mxu0 0
        %763 = vmatpush1.bf16.msra.mxu0 %v670
        %764 = vmatprep.subr.bf16.mxu0 0
        %765 = vmatpush1.bf16.msra.mxu0 %v701
        %766 = vmatprep.subr.bf16.mxu0 0
        %767 = vmatpush1.bf16.msra.mxu0 0
        %768 = vmatprep.subr.bf16.mxu0 0
        %769 = vmatpush1.bf16.msra.mxu0 0
        %770 = vmatprep.subr.bf16.mxu0 0
        %771 = vmatpush1.bf16.msra.mxu0 0
        %772 = vmatprep.subr.bf16.mxu0 0
        %773 = vmatpush1.bf16.msra.mxu0 0
        %774 = vmatprep.subr.bf16.mxu0 0
        %775 = vmatpush1.bf16.msra.mxu0 0
        %776 = vmatprep.subr.bf16.mxu0 0
        %777 = vmatpush1.bf16.msra.mxu0 0
        %778 = vmatprep.subr.bf16.mxu0 0
        %779 = vmatpush1.bf16.msra.mxu0 0
        %780 = vmatprep.subr.bf16.mxu0 0
        %781 = vmatpush1.bf16.msra.mxu0 0
        %782 = vmatprep.subr.bf16.mxu0 0
        %783 = vmatpush1.bf16.msra.mxu0 0
        %784 = vmatprep.subr.bf16.mxu0 0
        %785 = vmatpush1.bf16.msra.mxu0 0
        %786 = vmatprep.subr.bf16.mxu0 0
        %787 = vmatpush1.bf16.msra.mxu0 0
        %788 = vmatprep.mubr.bf16.mxu0 0
        %789 = vmatmul.mubr.bf16.gmra.mrb[0].mxu0 %v688
        %v790 = vpop.f32.mrb[0].mxu0
        %v791 = vadd.f32 %v587, %v790
        %v792 = vpop.f32.mrb[0].mxu0
        %v793 = vpop.f32.mrb[0].mxu0
        %v794 = vadd.f32 %v592, %v793
        %v795 = vpop.f32.mrb[0].mxu0
        %796 = vmatprep.mubr.bf16.mxu0 0
        %797 = vmatmul.mubr.bf16.gmra.mrb[0].mxu0 %v691
        %v798 = vpop.f32.mrb[0].mxu0
        %v799 = vadd.f32 %v597, %v798
        %v800 = vpop.f32.mrb[0].mxu0
        %v801 = vpop.f32.mrb[0].mxu0
        %v802 = vadd.f32 %v602, %v801
        %v803 = vpop.f32.mrb[0].mxu0
        %804 = vdwg.mxu0
        %vm805 = vcmp.gt.f32.partialorder %v738, 0.0
        %vm806 = vcmp.gt.f32.partialorder %v740, 0.0
        %vm807 = vcmp.gt.f32.partialorder %v791, 0.0
        %vm808 = vcmp.gt.f32.partialorder %v742, 0.0
        %vm809 = vcmp.gt.f32.partialorder %v744, 0.0
        %vm810 = vcmp.gt.f32.partialorder %v794, 0.0
        %vm811 = vcmp.gt.f32.partialorder %v748, 0.0
        %vm812 = vcmp.gt.f32.partialorder %v750, 0.0
        %vm813 = vcmp.gt.f32.partialorder %v799, 0.0
        %vm814 = vcmp.gt.f32.partialorder %v752, 0.0
        %vm815 = vcmp.gt.f32.partialorder %v754, 0.0
        %vm816 = vcmp.gt.f32.partialorder %v802, 0.0
        %v817 = vmul.f32 %v738, 0.1
        %v818 = vmul.f32 %v740, 0.1
        %v819 = vmul.f32 %v791, 0.1
        %v820 = vmul.f32 %v742, 0.1
        %v821 = vmul.f32 %v744, 0.1
        %v822 = vmul.f32 %v794, 0.1
        %v823 = vmul.f32 %v748, 0.1
        %v824 = vmul.f32 %v750, 0.1
        %v825 = vmul.f32 %v799, 0.1
        %v826 = vmul.f32 %v752, 0.1
        %v827 = vmul.f32 %v754, 0.1
        %v828 = vmul.f32 %v802, 0.1
        %v829 = vsel %vm805, %v738, %v817
        %v830 = vsel %vm806, %v740, %v818
        %v831 = vsel %vm807, %v791, %v819
        %v832 = vsel %vm808, %v742, %v820
        %v833 = vsel %vm809, %v744, %v821
        %v834 = vsel %vm810, %v794, %v822
        %v835 = vsel %vm811, %v748, %v823
        %v836 = vsel %vm812, %v750, %v824
        %v837 = vsel %vm813, %v799, %v825
        %v838 = vsel %vm814, %v752, %v826
        %v839 = vsel %vm815, %v754, %v827
        %v840 = vsel %vm816, %v802, %v828
        %v842 = vlaneseq
        %v843 = vshrl.u32 %v842, 7
        %v844 = vsub.s32 0, %v843
        %v845 = vrot.slane %v337, %v844
        %v846 = vlaneseq
        %v847 = vshrl.u32 %v846, 7
        %v848 = vsub.s32 1, %v847
        %v849 = vrot.slane %v337, %v848
        %v850 = vlaneseq
        %v851 = vshrl.u32 %v850, 7
        %v852 = vsub.s32 2, %v851
        %v853 = vrot.slane %v337, %v852
        %v857 = vmul.f32 %v829, %v845
        %v858 = vmul.f32 %v830, %v849
        %v859 = vmul.f32 %v831, %v853
        %v860 = vmul.f32 %v832, %v845
        %v861 = vmul.f32 %v833, %v849
        %v862 = vmul.f32 %v834, %v853
        %v863 = vmul.f32 %v835, %v845
        %v864 = vmul.f32 %v836, %v849
        %v865 = vmul.f32 %v837, %v853
        %v866 = vmul.f32 %v838, %v845
        %v867 = vmul.f32 %v839, %v849
        %v868 = vmul.f32 %v840, %v853
        %869 = vrot.lane.b32.xlu0 %v857, 19
        %v870 = vpop.permute.xlu0 %869
        %871 = vrot.lane.b32.xlu0 %v860, 19
        %v872 = vpop.permute.xlu0 %871
        %873 = vrot.lane.b32.xlu0 %v863, 19
        %v874 = vpop.permute.xlu0 %873
        %875 = vrot.lane.b32.xlu0 %v866, 19
        %v876 = vpop.permute.xlu0 %875
        %877 = vrot.lane.b32.xlu0 %v858, 19
        %v878 = vpop.permute.xlu0 %877
        %879 = vrot.lane.b32.xlu0 %v861, 19
        %v880 = vpop.permute.xlu0 %879
        %881 = vrot.lane.b32.xlu0 %v864, 19
        %v882 = vpop.permute.xlu0 %881
        %883 = vrot.lane.b32.xlu0 %v867, 19
        %v884 = vpop.permute.xlu0 %883
        %885 = vrot.lane.b32.xlu0 %v859, 19
        %v886 = vpop.permute.xlu0 %885
        %887 = vrot.lane.b32.xlu0 %v862, 19
        %v888 = vpop.permute.xlu0 %887
        %889 = vrot.lane.b32.xlu0 %v865, 19
        %v890 = vpop.permute.xlu0 %889
        %891 = vrot.lane.b32.xlu0 %v868, 19
        %v892 = vpop.permute.xlu0 %891
        %v893 = vsel %vm349, %v878, %v886
        %v894 = vsel %vm349, %v880, %v888
        %v895 = vsel %vm349, %v882, %v890
        %v896 = vsel %vm349, %v884, %v892
        %v897 = vsel %vm349, %v870, %v878
        %v898 = vsel %vm349, %v872, %v880
        %v899 = vsel %vm349, %v874, %v882
        %v900 = vsel %vm349, %v876, %v884
        %v901 = vsel %vm349, %v886, %v870
        %v902 = vsel %vm349, %v888, %v872
        %v903 = vsel %vm349, %v890, %v874
        %v904 = vsel %vm349, %v892, %v876
        %v905 = vpack.c.bf16 %v902, %v901
        %v906 = vpack.c.bf16 %v898, %v897
        %v907 = vpack.c.bf16 %v894, %v893
        %v908 = vpack.c.bf16 %v904, %v903
        %v909 = vpack.c.bf16 %v900, %v899
        %v910 = vpack.c.bf16 %v896, %v895
        %911 = vst [vmem:[#allocation3] sm:$0xff] %v905
        %912 = vst [vmem:[#allocation3 + $0x8] sm:$0xff] %v906
        %913 = vst [vmem:[#allocation3 + $0x10] sm:$0xff] %v907
        %914 = vst [vmem:[#allocation3 + $0x18] sm:$0xff] %v908
        %915 = vst [vmem:[#allocation3 + $0x20] sm:$0xff] %v909
        %916 = vst [vmem:[#allocation3 + $0x28] sm:$0xff] %v910
        %917 = vrot.lane.b32.xlu0 %v857, 18
        %v918 = vpop.permute.xlu0 %917
        %919 = vrot.lane.b32.xlu0 %v860, 18
        %v920 = vpop.permute.xlu0 %919
        %921 = vrot.lane.b32.xlu0 %v863, 18
        %v922 = vpop.permute.xlu0 %921
        %923 = vrot.lane.b32.xlu0 %v866, 18
        %v924 = vpop.permute.xlu0 %923
        %925 = vrot.lane.b32.xlu0 %v858, 18
        %v926 = vpop.permute.xlu0 %925
        %927 = vrot.lane.b32.xlu0 %v861, 18
        %v928 = vpop.permute.xlu0 %927
        %929 = vrot.lane.b32.xlu0 %v864, 18
        %v930 = vpop.permute.xlu0 %929
        %931 = vrot.lane.b32.xlu0 %v867, 18
        %v932 = vpop.permute.xlu0 %931
        %933 = vrot.lane.b32.xlu0 %v859, 18
        %v934 = vpop.permute.xlu0 %933
        %935 = vrot.lane.b32.xlu0 %v862, 18
        %v936 = vpop.permute.xlu0 %935
        %937 = vrot.lane.b32.xlu0 %v865, 18
        %v938 = vpop.permute.xlu0 %937
        %939 = vrot.lane.b32.xlu0 %v868, 18
        %v940 = vpop.permute.xlu0 %939
        %v941 = vsel %vm374, %v926, %v934
        %v942 = vsel %vm374, %v928, %v936
        %v943 = vsel %vm374, %v930, %v938
        %v944 = vsel %vm374, %v932, %v940
        %v945 = vsel %vm374, %v918, %v926
        %v946 = vsel %vm374, %v920, %v928
        %v947 = vsel %vm374, %v922, %v930
        %v948 = vsel %vm374, %v924, %v932
        %v949 = vsel %vm374, %v934, %v918
        %v950 = vsel %vm374, %v936, %v920
        %v951 = vsel %vm374, %v938, %v922
        %v952 = vsel %vm374, %v940, %v924
        %v953 = vpack.c.bf16 %v950, %v949
        %v954 = vpack.c.bf16 %v946, %v945
        %v955 = vpack.c.bf16 %v942, %v941
        %v956 = vpack.c.bf16 %v952, %v951
        %v957 = vpack.c.bf16 %v948, %v947
        %v958 = vpack.c.bf16 %v944, %v943
        %959 = vst [vmem:[#allocation3 + $0x30] sm:$0xff] %v953
        %960 = vst [vmem:[#allocation3 + $0x38] sm:$0xff] %v954
        %961 = vst [vmem:[#allocation3 + $0x40] sm:$0xff] %v955
        %962 = vst [vmem:[#allocation3 + $0x48] sm:$0xff] %v956
        %963 = vst [vmem:[#allocation3 + $0x50] sm:$0xff] %v957
        %964 = vst [vmem:[#allocation3 + $0x58] sm:$0xff] %v958
        %965 = vrot.lane.b32.xlu0 %v857, 17
        %v966 = vpop.permute.xlu0 %965
        %967 = vrot.lane.b32.xlu0 %v860, 17
        %v968 = vpop.permute.xlu0 %967
        %969 = vrot.lane.b32.xlu0 %v863, 17
        %v970 = vpop.permute.xlu0 %969
        %971 = vrot.lane.b32.xlu0 %v866, 17
        %v972 = vpop.permute.xlu0 %971
        %973 = vrot.lane.b32.xlu0 %v858, 17
        %v974 = vpop.permute.xlu0 %973
        %975 = vrot.lane.b32.xlu0 %v861, 17
        %v976 = vpop.permute.xlu0 %975
        %977 = vrot.lane.b32.xlu0 %v864, 17
        %v978 = vpop.permute.xlu0 %977
        %979 = vrot.lane.b32.xlu0 %v867, 17
        %v980 = vpop.permute.xlu0 %979
        %981 = vrot.lane.b32.xlu0 %v859, 17
        %v982 = vpop.permute.xlu0 %981
        %983 = vrot.lane.b32.xlu0 %v862, 17
        %v984 = vpop.permute.xlu0 %983
        %985 = vrot.lane.b32.xlu0 %v865, 17
        %v986 = vpop.permute.xlu0 %985
        %987 = vrot.lane.b32.xlu0 %v868, 17
        %v988 = vpop.permute.xlu0 %987
        %v989 = vsel %vm399, %v974, %v982
        %v990 = vsel %vm399, %v976, %v984
        %v991 = vsel %vm399, %v978, %v986
        %v992 = vsel %vm399, %v980, %v988
        %v993 = vsel %vm399, %v966, %v974
        %v994 = vsel %vm399, %v968, %v976
        %v995 = vsel %vm399, %v970, %v978
        %v996 = vsel %vm399, %v972, %v980
        %v997 = vsel %vm399, %v982, %v966
        %v998 = vsel %vm399, %v984, %v968
        %v999 = vsel %vm399, %v986, %v970
        %v1000 = vsel %vm399, %v988, %v972
        %v1001 = vpack.c.bf16 %v998, %v997
        %v1002 = vpack.c.bf16 %v994, %v993
        %v1003 = vpack.c.bf16 %v990, %v989
        %v1004 = vpack.c.bf16 %v1000, %v999
        %v1005 = vpack.c.bf16 %v996, %v995
        %v1006 = vpack.c.bf16 %v992, %v991
        %1007 = vst [vmem:[#allocation3 + $0x60] sm:$0xff] %v1001
        %1008 = vst [vmem:[#allocation3 + $0x68] sm:$0xff] %v1002
        %1009 = vst [vmem:[#allocation3 + $0x70] sm:$0xff] %v1003
        %1010 = vst [vmem:[#allocation3 + $0x78] sm:$0xff] %v1004
        %1011 = vst [vmem:[#allocation3 + $0x80] sm:$0xff] %v1005
        %1012 = vst [vmem:[#allocation3 + $0x88] sm:$0xff] %v1006
        %1013 = vrot.lane.b32.xlu0 %v857, 1
        %v1014 = vpop.permute.xlu0 %1013
        %1015 = vrot.lane.b32.xlu0 %v860, 1
        %v1016 = vpop.permute.xlu0 %1015
        %1017 = vrot.lane.b32.xlu0 %v863, 1
        %v1018 = vpop.permute.xlu0 %1017
        %1019 = vrot.lane.b32.xlu0 %v866, 1
        %v1020 = vpop.permute.xlu0 %1019
        %1021 = vrot.lane.b32.xlu0 %v858, 1
        %v1022 = vpop.permute.xlu0 %1021
        %1023 = vrot.lane.b32.xlu0 %v861, 1
        %v1024 = vpop.permute.xlu0 %1023
        %1025 = vrot.lane.b32.xlu0 %v864, 1
        %v1026 = vpop.permute.xlu0 %1025
        %1027 = vrot.lane.b32.xlu0 %v867, 1
        %v1028 = vpop.permute.xlu0 %1027
        %1029 = vrot.lane.b32.xlu0 %v859, 1
        %v1030 = vpop.permute.xlu0 %1029
        %1031 = vrot.lane.b32.xlu0 %v862, 1
        %v1032 = vpop.permute.xlu0 %1031
        %1033 = vrot.lane.b32.xlu0 %v865, 1
        %v1034 = vpop.permute.xlu0 %1033
        %1035 = vrot.lane.b32.xlu0 %v868, 1
        %v1036 = vpop.permute.xlu0 %1035
        %v1037 = vsel %vm424, %v1022, %v1030
        %v1038 = vsel %vm424, %v1024, %v1032
        %v1039 = vsel %vm424, %v1026, %v1034
        %v1040 = vsel %vm424, %v1028, %v1036
        %v1041 = vsel %vm424, %v1014, %v1022
        %v1042 = vsel %vm424, %v1016, %v1024
        %v1043 = vsel %vm424, %v1018, %v1026
        %v1044 = vsel %vm424, %v1020, %v1028
        %v1045 = vsel %vm424, %v1030, %v1014
        %v1046 = vsel %vm424, %v1032, %v1016
        %v1047 = vsel %vm424, %v1034, %v1018
        %v1048 = vsel %vm424, %v1036, %v1020
        %v1049 = vpack.c.bf16 %v1046, %v1045
        %v1050 = vpack.c.bf16 %v1042, %v1041
        %v1051 = vpack.c.bf16 %v1038, %v1037
        %v1052 = vpack.c.bf16 %v1048, %v1047
        %v1053 = vpack.c.bf16 %v1044, %v1043
        %v1054 = vpack.c.bf16 %v1040, %v1039
        %1055 = vst [vmem:[#allocation3 + $0x90] sm:$0xff] %v1049
        %1056 = vst [vmem:[#allocation3 + $0x98] sm:$0xff] %v1050
        %1057 = vst [vmem:[#allocation3 + $0xa0] sm:$0xff] %v1051
        %1058 = vst [vmem:[#allocation3 + $0xa8] sm:$0xff] %v1052
        %1059 = vst [vmem:[#allocation3 + $0xb0] sm:$0xff] %v1053
        %1060 = vst [vmem:[#allocation3 + $0xb8] sm:$0xff] %v1054
        %v1061 = vpack.c.bf16 %v860, %v857
        %v1062 = vpack.c.bf16 %v861, %v858
        %v1063 = vpack.c.bf16 %v862, %v859
        %v1064 = vpack.c.bf16 %v866, %v863
        %v1065 = vpack.c.bf16 %v867, %v864
        %v1066 = vpack.c.bf16 %v868, %v865
        %1067 = vst [vmem:[#allocation3 + $0xc0] sm:$0xff] %v1061
        %1068 = vst [vmem:[#allocation3 + $0xc8] sm:$0xff] %v1062
        %1069 = vst [vmem:[#allocation3 + $0xd0] sm:$0xff] %v1063
        %1070 = vst [vmem:[#allocation3 + $0xd8] sm:$0xff] %v1064
        %1071 = vst [vmem:[#allocation3 + $0xe0] sm:$0xff] %v1065
        %1072 = vst [vmem:[#allocation3 + $0xe8] sm:$0xff] %v1066
        %1073 = vrot.lane.b32.xlu0 %v857, 127
        %v1074 = vpop.permute.xlu0 %1073
        %1075 = vrot.lane.b32.xlu0 %v860, 127
        %v1076 = vpop.permute.xlu0 %1075
        %1077 = vrot.lane.b32.xlu0 %v863, 127
        %v1078 = vpop.permute.xlu0 %1077
        %1079 = vrot.lane.b32.xlu0 %v866, 127
        %v1080 = vpop.permute.xlu0 %1079
        %1081 = vrot.lane.b32.xlu0 %v858, 127
        %v1082 = vpop.permute.xlu0 %1081
        %1083 = vrot.lane.b32.xlu0 %v861, 127
        %v1084 = vpop.permute.xlu0 %1083
        %1085 = vrot.lane.b32.xlu0 %v864, 127
        %v1086 = vpop.permute.xlu0 %1085
        %1087 = vrot.lane.b32.xlu0 %v867, 127
        %v1088 = vpop.permute.xlu0 %1087
        %1089 = vrot.lane.b32.xlu0 %v859, 127
        %v1090 = vpop.permute.xlu0 %1089
        %1091 = vrot.lane.b32.xlu0 %v862, 127
        %v1092 = vpop.permute.xlu0 %1091
        %1093 = vrot.lane.b32.xlu0 %v865, 127
        %v1094 = vpop.permute.xlu0 %1093
        %1095 = vrot.lane.b32.xlu0 %v868, 127
        %v1096 = vpop.permute.xlu0 %1095
        %v1097 = vsel %vm464, %v1082, %v1090
        %v1098 = vsel %vm464, %v1084, %v1092
        %v1099 = vsel %vm464, %v1086, %v1094
        %v1100 = vsel %vm464, %v1088, %v1096
        %v1101 = vsel %vm464, %v1074, %v1082
        %v1102 = vsel %vm464, %v1076, %v1084
        %v1103 = vsel %vm464, %v1078, %v1086
        %v1104 = vsel %vm464, %v1080, %v1088
        %v1105 = vsel %vm464, %v1090, %v1074
        %v1106 = vsel %vm464, %v1092, %v1076
        %v1107 = vsel %vm464, %v1094, %v1078
        %v1108 = vsel %vm464, %v1096, %v1080
        %v1109 = vpack.c.bf16 %v1102, %v1101
        %v1110 = vpack.c.bf16 %v1098, %v1097
        %v1111 = vpack.c.bf16 %v1106, %v1105
        %v1112 = vpack.c.bf16 %v1104, %v1103
        %v1113 = vpack.c.bf16 %v1100, %v1099
        %v1114 = vpack.c.bf16 %v1108, %v1107
        %1115 = vst [vmem:[#allocation3 + $0xf0] sm:$0xff] %v1109
        %1116 = vst [vmem:[#allocation3 + $0xf8] sm:$0xff] %v1110
        %1117 = vst [vmem:[#allocation3 + $0x100] sm:$0xff] %v1111
        %1118 = vst [vmem:[#allocation3 + $0x108] sm:$0xff] %v1112
        %1119 = vst [vmem:[#allocation3 + $0x110] sm:$0xff] %v1113
        %1120 = vst [vmem:[#allocation3 + $0x118] sm:$0xff] %v1114
        %1121 = vrot.lane.b32.xlu0 %v857, 111
        %v1122 = vpop.permute.xlu0 %1121
        %1123 = vrot.lane.b32.xlu0 %v860, 111
        %v1124 = vpop.permute.xlu0 %1123
        %1125 = vrot.lane.b32.xlu0 %v863, 111
        %v1126 = vpop.permute.xlu0 %1125
        %1127 = vrot.lane.b32.xlu0 %v866, 111
        %v1128 = vpop.permute.xlu0 %1127
        %1129 = vrot.lane.b32.xlu0 %v858, 111
        %v1130 = vpop.permute.xlu0 %1129
        %1131 = vrot.lane.b32.xlu0 %v861, 111
        %v1132 = vpop.permute.xlu0 %1131
        %1133 = vrot.lane.b32.xlu0 %v864, 111
        %v1134 = vpop.permute.xlu0 %1133
        %1135 = vrot.lane.b32.xlu0 %v867, 111
        %v1136 = vpop.permute.xlu0 %1135
        %1137 = vrot.lane.b32.xlu0 %v859, 111
        %v1138 = vpop.permute.xlu0 %1137
        %1139 = vrot.lane.b32.xlu0 %v862, 111
        %v1140 = vpop.permute.xlu0 %1139
        %1141 = vrot.lane.b32.xlu0 %v865, 111
        %v1142 = vpop.permute.xlu0 %1141
        %1143 = vrot.lane.b32.xlu0 %v868, 111
        %v1144 = vpop.permute.xlu0 %1143
        %v1145 = vsel %vm489, %v1130, %v1138
        %v1146 = vsel %vm489, %v1132, %v1140
        %v1147 = vsel %vm489, %v1134, %v1142
        %v1148 = vsel %vm489, %v1136, %v1144
        %v1149 = vsel %vm489, %v1122, %v1130
        %v1150 = vsel %vm489, %v1124, %v1132
        %v1151 = vsel %vm489, %v1126, %v1134
        %v1152 = vsel %vm489, %v1128, %v1136
        %v1153 = vsel %vm489, %v1138, %v1122
        %v1154 = vsel %vm489, %v1140, %v1124
        %v1155 = vsel %vm489, %v1142, %v1126
        %v1156 = vsel %vm489, %v1144, %v1128
        %v1157 = vpack.c.bf16 %v1150, %v1149
        %v1158 = vpack.c.bf16 %v1146, %v1145
        %v1159 = vpack.c.bf16 %v1154, %v1153
        %v1160 = vpack.c.bf16 %v1152, %v1151
        %v1161 = vpack.c.bf16 %v1148, %v1147
        %v1162 = vpack.c.bf16 %v1156, %v1155
        %1163 = vst [vmem:[#allocation3 + $0x120] sm:$0xff] %v1157
        %1164 = vst [vmem:[#allocation3 + $0x128] sm:$0xff] %v1158
        %1165 = vst [vmem:[#allocation3 + $0x130] sm:$0xff] %v1159
        %1166 = vst [vmem:[#allocation3 + $0x138] sm:$0xff] %v1160
        %1167 = vst [vmem:[#allocation3 + $0x140] sm:$0xff] %v1161
        %1168 = vst [vmem:[#allocation3 + $0x148] sm:$0xff] %v1162
        %1169 = vrot.lane.b32.xlu0 %v857, 110
        %v1170 = vpop.permute.xlu0 %1169
        %1171 = vrot.lane.b32.xlu0 %v860, 110
        %v1172 = vpop.permute.xlu0 %1171
        %1173 = vrot.lane.b32.xlu0 %v863, 110
        %v1174 = vpop.permute.xlu0 %1173
        %1175 = vrot.lane.b32.xlu0 %v866, 110
        %v1176 = vpop.permute.xlu0 %1175
        %1177 = vrot.lane.b32.xlu0 %v858, 110
        %v1178 = vpop.permute.xlu0 %1177
        %1179 = vrot.lane.b32.xlu0 %v861, 110
        %v1180 = vpop.permute.xlu0 %1179
        %1181 = vrot.lane.b32.xlu0 %v864, 110
        %v1182 = vpop.permute.xlu0 %1181
        %1183 = vrot.lane.b32.xlu0 %v867, 110
        %v1184 = vpop.permute.xlu0 %1183
        %1185 = vrot.lane.b32.xlu0 %v859, 110
        %v1186 = vpop.permute.xlu0 %1185
        %1187 = vrot.lane.b32.xlu0 %v862, 110
        %v1188 = vpop.permute.xlu0 %1187
        %1189 = vrot.lane.b32.xlu0 %v865, 110
        %v1190 = vpop.permute.xlu0 %1189
        %1191 = vrot.lane.b32.xlu0 %v868, 110
        %v1192 = vpop.permute.xlu0 %1191
        %v1193 = vsel %vm514, %v1178, %v1186
        %v1194 = vsel %vm514, %v1180, %v1188
        %v1195 = vsel %vm514, %v1182, %v1190
        %v1196 = vsel %vm514, %v1184, %v1192
        %v1197 = vsel %vm514, %v1170, %v1178
        %v1198 = vsel %vm514, %v1172, %v1180
        %v1199 = vsel %vm514, %v1174, %v1182
        %v1200 = vsel %vm514, %v1176, %v1184
        %v1201 = vsel %vm514, %v1186, %v1170
        %v1202 = vsel %vm514, %v1188, %v1172
        %v1203 = vsel %vm514, %v1190, %v1174
        %v1204 = vsel %vm514, %v1192, %v1176
        %v1205 = vpack.c.bf16 %v1198, %v1197
        %v1206 = vpack.c.bf16 %v1194, %v1193
        %v1207 = vpack.c.bf16 %v1202, %v1201
        %v1208 = vpack.c.bf16 %v1200, %v1199
        %v1209 = vpack.c.bf16 %v1196, %v1195
        %v1210 = vpack.c.bf16 %v1204, %v1203
        %1211 = vst [vmem:[#allocation3 + $0x150] sm:$0xff] %v1205
        %1212 = vst [vmem:[#allocation3 + $0x158] sm:$0xff] %v1206
        %1213 = vst [vmem:[#allocation3 + $0x160] sm:$0xff] %v1207
        %1214 = vst [vmem:[#allocation3 + $0x168] sm:$0xff] %v1208
        %1215 = vst [vmem:[#allocation3 + $0x170] sm:$0xff] %v1209
        %1216 = vst [vmem:[#allocation3 + $0x178] sm:$0xff] %v1210
        %1217 = vrot.lane.b32.xlu0 %v857, 109
        %v1218 = vpop.permute.xlu0 %1217
        %1219 = vrot.lane.b32.xlu0 %v860, 109
        %v1220 = vpop.permute.xlu0 %1219
        %1221 = vrot.lane.b32.xlu0 %v863, 109
        %v1222 = vpop.permute.xlu0 %1221
        %1223 = vrot.lane.b32.xlu0 %v866, 109
        %v1224 = vpop.permute.xlu0 %1223
        %1225 = vrot.lane.b32.xlu0 %v858, 109
        %v1226 = vpop.permute.xlu0 %1225
        %1227 = vrot.lane.b32.xlu0 %v861, 109
        %v1228 = vpop.permute.xlu0 %1227
        %1229 = vrot.lane.b32.xlu0 %v864, 109
        %v1230 = vpop.permute.xlu0 %1229
        %1231 = vrot.lane.b32.xlu0 %v867, 109
        %v1232 = vpop.permute.xlu0 %1231
        %1233 = vrot.lane.b32.xlu0 %v859, 109
        %v1234 = vpop.permute.xlu0 %1233
        %1235 = vrot.lane.b32.xlu0 %v862, 109
        %v1236 = vpop.permute.xlu0 %1235
        %1237 = vrot.lane.b32.xlu0 %v865, 109
        %v1238 = vpop.permute.xlu0 %1237
        %1239 = vrot.lane.b32.xlu0 %v868, 109
        %v1240 = vpop.permute.xlu0 %1239
        %v1241 = vsel %vm539, %v1226, %v1234
        %v1242 = vsel %vm539, %v1228, %v1236
        %v1243 = vsel %vm539, %v1230, %v1238
        %v1244 = vsel %vm539, %v1232, %v1240
        %v1245 = vsel %vm539, %v1218, %v1226
        %v1246 = vsel %vm539, %v1220, %v1228
        %v1247 = vsel %vm539, %v1222, %v1230
        %v1248 = vsel %vm539, %v1224, %v1232
        %v1249 = vsel %vm539, %v1234, %v1218
        %v1250 = vsel %vm539, %v1236, %v1220
        %v1251 = vsel %vm539, %v1238, %v1222
        %v1252 = vsel %vm539, %v1240, %v1224
        %v1253 = vpack.c.bf16 %v1246, %v1245
        %v1254 = vpack.c.bf16 %v1242, %v1241
        %v1255 = vpack.c.bf16 %v1250, %v1249
        %v1256 = vpack.c.bf16 %v1248, %v1247
        %v1257 = vpack.c.bf16 %v1244, %v1243
        %v1258 = vpack.c.bf16 %v1252, %v1251
        %1259 = vst [vmem:[#allocation3 + $0x180] sm:$0xff] %v1253
        %1260 = vst [vmem:[#allocation3 + $0x188] sm:$0xff] %v1254
        %1261 = vst [vmem:[#allocation3 + $0x190] sm:$0xff] %v1255
        %1262 = vst [vmem:[#allocation3 + $0x198] sm:$0xff] %v1256
        %1263 = vst [vmem:[#allocation3 + $0x1a0] sm:$0xff] %v1257
        %1264 = vst [vmem:[#allocation3 + $0x1a8] sm:$0xff] %v1258
        %v1265 = vld [vmem:[#allocation7] sm:$0xff]
        %v1266 = vld [vmem:[#allocation7 + $0x8] sm:$0xf]
        %v1267 = vld [vmem:[#allocation7 + $0xc] sm:$0xff]
        %v1268 = vld [vmem:[#allocation7 + $0x14] sm:$0xf]
        %v1269 = vld [vmem:[#allocation3] sm:$0xff]
        %v1270 = vld [vmem:[#allocation3 + $0x8] sm:$0xff]
        %v1271 = vld [vmem:[#allocation3 + $0x10] sm:$0xff]
        %v1272 = vld [vmem:[#allocation3 + $0x18] sm:$0xff]
        %v1273 = vld [vmem:[#allocation3 + $0x20] sm:$0xff]
        %v1274 = vld [vmem:[#allocation3 + $0x28] sm:$0xff]
        %v1275 = vld [vmem:[#allocation3 + $0x30] sm:$0xff]
        %v1276 = vld [vmem:[#allocation3 + $0x38] sm:$0xff]
        %v1277 = vld [vmem:[#allocation3 + $0x40] sm:$0xff]
        %v1278 = vld [vmem:[#allocation3 + $0x48] sm:$0xff]
        %v1279 = vld [vmem:[#allocation3 + $0x50] sm:$0xff]
        %v1280 = vld [vmem:[#allocation3 + $0x58] sm:$0xff]
        %v1281 = vld [vmem:[#allocation3 + $0x60] sm:$0xff]
        %v1282 = vld [vmem:[#allocation3 + $0x68] sm:$0xff]
        %v1283 = vld [vmem:[#allocation3 + $0x70] sm:$0xff]
        %v1284 = vld [vmem:[#allocation3 + $0x78] sm:$0xff]
        %v1285 = vld [vmem:[#allocation3 + $0x80] sm:$0xff]
        %v1286 = vld [vmem:[#allocation3 + $0x88] sm:$0xff]
        %v1287 = vld [vmem:[#allocation3 + $0x90] sm:$0xff]
        %v1288 = vld [vmem:[#allocation3 + $0x98] sm:$0xff]
        %v1289 = vld [vmem:[#allocation3 + $0xa0] sm:$0xff]
        %v1290 = vld [vmem:[#allocation3 + $0xa8] sm:$0xff]
        %v1291 = vld [vmem:[#allocation3 + $0xb0] sm:$0xff]
        %v1292 = vld [vmem:[#allocation3 + $0xb8] sm:$0xff]
        %v1293 = vld [vmem:[#allocation3 + $0xc0] sm:$0xff]
        %v1294 = vld [vmem:[#allocation3 + $0xc8] sm:$0xff]
        %v1295 = vld [vmem:[#allocation3 + $0xd0] sm:$0xff]
        %v1296 = vld [vmem:[#allocation3 + $0xd8] sm:$0xff]
        %v1297 = vld [vmem:[#allocation3 + $0xe0] sm:$0xff]
        %v1298 = vld [vmem:[#allocation3 + $0xe8] sm:$0xff]
        %v1299 = vld [vmem:[#allocation3 + $0xf0] sm:$0xff]
        %v1300 = vld [vmem:[#allocation3 + $0xf8] sm:$0xff]
        %v1301 = vld [vmem:[#allocation3 + $0x100] sm:$0xff]
        %v1302 = vld [vmem:[#allocation3 + $0x108] sm:$0xff]
        %v1303 = vld [vmem:[#allocation3 + $0x110] sm:$0xff]
        %v1304 = vld [vmem:[#allocation3 + $0x118] sm:$0xff]
        %v1305 = vld [vmem:[#allocation3 + $0x120] sm:$0xff]
        %v1306 = vld [vmem:[#allocation3 + $0x128] sm:$0xff]
        %v1307 = vld [vmem:[#allocation3 + $0x130] sm:$0xff]
        %v1308 = vld [vmem:[#allocation3 + $0x138] sm:$0xff]
        %v1309 = vld [vmem:[#allocation3 + $0x140] sm:$0xff]
        %v1310 = vld [vmem:[#allocation3 + $0x148] sm:$0xff]
        %v1311 = vld [vmem:[#allocation3 + $0x150] sm:$0xff]
        %v1312 = vld [vmem:[#allocation3 + $0x158] sm:$0xff]
        %v1313 = vld [vmem:[#allocation3 + $0x160] sm:$0xff]
        %v1314 = vld [vmem:[#allocation3 + $0x168] sm:$0xff]
        %v1315 = vld [vmem:[#allocation3 + $0x170] sm:$0xff]
        %v1316 = vld [vmem:[#allocation3 + $0x178] sm:$0xff]
        %v1317 = vld [vmem:[#allocation3 + $0x180] sm:$0xff]
        %v1318 = vld [vmem:[#allocation3 + $0x188] sm:$0xff]
        %v1319 = vld [vmem:[#allocation3 + $0x190] sm:$0xff]
        %v1320 = vld [vmem:[#allocation3 + $0x198] sm:$0xff]
        %v1321 = vld [vmem:[#allocation3 + $0x1a0] sm:$0xff]
        %v1322 = vld [vmem:[#allocation3 + $0x1a8] sm:$0xff]
        %v1323 = vld [vmem:[%s5] sm:$0xff]
        %v1324 = vld [vmem:[%s5 + $0x8] sm:$0xff]
        %1326 = vset.pattern.permute.xlu0 0
        %1327 = vperm.xlu0 %1326, %v1323
        %v1328 = vpop.permute.xlu0 %1327
        %1331 = vset.pattern.permute.xlu0 0
        %1332 = vperm.xlu0 %1331, %v1324
        %v1333 = vpop.permute.xlu0 %1332
        %v1339 = vunpack.c.l.b16 %v1265
        %v1340 = vunpack.c.h.b16 %v1265
        %v1341 = vunpack.c.l.b16 %v1266
        %v1342 = vunpack.c.l.b16 %v1267
        %v1343 = vunpack.c.h.b16 %v1267
        %v1344 = vunpack.c.l.b16 %v1268
        %v1345 = vpack.c.b16 %v1342, %v1339
        %v1346 = vpack.c.b16 %v1343, %v1340
        %v1347 = vpack.c.b16 %v1344, %v1341
        %vm1350 = vcmask 261120
        %v1352 = vsel %vm1350, %v1347, 0
        %1354 = vmatprep.subr.bf16.mxu0 %v1270
        %1355 = vmatpush1.bf16.msra.mxu0 %v1269
        %1356 = vmatprep.subr.bf16.mxu0 %v1273
        %1357 = vmatpush1.bf16.msra.mxu0 %v1272
        %1358 = vmatprep.subr.bf16.mxu0 %v1276
        %1359 = vmatpush1.bf16.msra.mxu0 %v1275
        %1360 = vmatprep.subr.bf16.mxu0 %v1279
        %1361 = vmatpush1.bf16.msra.mxu0 %v1278
        %1362 = vmatprep.subr.bf16.mxu0 %v1282
        %1363 = vmatpush1.bf16.msra.mxu0 %v1281
        %1364 = vmatprep.subr.bf16.mxu0 %v1285
        %1365 = vmatpush1.bf16.msra.mxu0 %v1284
        %1366 = vmatprep.subr.bf16.mxu0 %v1288
        %1367 = vmatpush1.bf16.msra.mxu0 %v1287
        %1368 = vmatprep.subr.bf16.mxu0 %v1291
        %1369 = vmatpush1.bf16.msra.mxu0 %v1290
        %1370 = vmatprep.subr.bf16.mxu0 %v1294
        %1371 = vmatpush1.bf16.msra.mxu0 %v1293
        %1372 = vmatprep.subr.bf16.mxu0 %v1297
        %1373 = vmatpush1.bf16.msra.mxu0 %v1296
        %1374 = vmatprep.subr.bf16.mxu0 %v1300
        %1375 = vmatpush1.bf16.msra.mxu0 %v1299
        %1376 = vmatprep.subr.bf16.mxu0 %v1303
        %1377 = vmatpush1.bf16.msra.mxu0 %v1302
        %1378 = vmatprep.subr.bf16.mxu0 %v1306
        %1379 = vmatpush1.bf16.msra.mxu0 %v1305
        %1380 = vmatprep.subr.bf16.mxu0 %v1309
        %1381 = vmatpush1.bf16.msra.mxu0 %v1308
        %1382 = vmatprep.subr.bf16.mxu0 %v1312
        %1383 = vmatpush1.bf16.msra.mxu0 %v1311
        %1384 = vmatprep.subr.bf16.mxu0 %v1315
        %1385 = vmatpush1.bf16.msra.mxu0 %v1314
        %1386 = vmatprep.mubr.bf16.mxu0 %v1346
        %1387 = vmatmul.mubr.bf16.gmra.mrb[0].mxu0 %v1345
        %v1388 = vpop.f32.mrb[0].mxu0
        %v1389 = vadd.f32 %v1328, %v1388
        %v1390 = vpop.f32.mrb[0].mxu0
        %v1391 = vadd.f32 %v1328, %v1390
        %v1392 = vpop.f32.mrb[0].mxu0
        %v1393 = vadd.f32 %v1333, %v1392
        %v1394 = vpop.f32.mrb[0].mxu0
        %v1395 = vadd.f32 %v1333, %v1394
        %1396 = vdwg.mxu0
        %1397 = vmatprep.subr.bf16.mxu0 %v1318
        %1398 = vmatpush1.bf16.msra.mxu0 %v1317
        %1399 = vmatprep.subr.bf16.mxu0 %v1321
        %1400 = vmatpush1.bf16.msra.mxu0 %v1320
        %1401 = vmatprep.subr.bf16.mxu0 0
        %1402 = vmatpush1.bf16.msra.mxu0 0
        %1403 = vmatprep.subr.bf16.mxu0 0
        %1404 = vmatpush1.bf16.msra.mxu0 0
        %1405 = vmatprep.subr.bf16.mxu0 0
        %1406 = vmatpush1.bf16.msra.mxu0 0
        %1407 = vmatprep.subr.bf16.mxu0 0
        %1408 = vmatpush1.bf16.msra.mxu0 0
        %1409 = vmatprep.subr.bf16.mxu0 0
        %1410 = vmatpush1.bf16.msra.mxu0 0
        %1411 = vmatprep.subr.bf16.mxu0 0
        %1412 = vmatpush1.bf16.msra.mxu0 0
        %1413 = vmatprep.subr.bf16.mxu0 0
        %1414 = vmatpush1.bf16.msra.mxu0 0
        %1415 = vmatprep.subr.bf16.mxu0 0
        %1416 = vmatpush1.bf16.msra.mxu0 0
        %1417 = vmatprep.subr.bf16.mxu0 0
        %1418 = vmatpush1.bf16.msra.mxu0 0
        %1419 = vmatprep.subr.bf16.mxu0 0
        %1420 = vmatpush1.bf16.msra.mxu0 0
        %1421 = vmatprep.subr.bf16.mxu0 0
        %1422 = vmatpush1.bf16.msra.mxu0 0
        %1423 = vmatprep.subr.bf16.mxu0 0
        %1424 = vmatpush1.bf16.msra.mxu0 0
        %1425 = vmatprep.subr.bf16.mxu0 0
        %1426 = vmatpush1.bf16.msra.mxu0 0
        %1427 = vmatprep.subr.bf16.mxu0 0
        %1428 = vmatpush1.bf16.msra.mxu0 0
        %1429 = vmatprep.mubr.bf16.mxu0 0
        %1430 = vmatmul.mubr.bf16.gmra.mrb[0].mxu0 %v1352
        %v1431 = vpop.f32.mrb[0].mxu0
        %v1432 = vadd.f32 %v1389, %v1431
        %v1433 = vpop.f32.mrb[0].mxu0
        %v1434 = vadd.f32 %v1391, %v1433
        %v1435 = vpop.f32.mrb[0].mxu0
        %v1436 = vadd.f32 %v1393, %v1435
        %v1437 = vpop.f32.mrb[0].mxu0
        %v1438 = vadd.f32 %v1395, %v1437
        %1439 = vdwg.mxu0
        %1440 = vmatprep.subr.bf16.mxu0 0
        %1441 = vmatpush1.bf16.msra.mxu0 %v1271
        %1442 = vmatprep.subr.bf16.mxu0 0
        %1443 = vmatpush1.bf16.msra.mxu0 %v1274
        %1444 = vmatprep.subr.bf16.mxu0 0
        %1445 = vmatpush1.bf16.msra.mxu0 %v1277
        %1446 = vmatprep.subr.bf16.mxu0 0
        %1447 = vmatpush1.bf16.msra.mxu0 %v1280
        %1448 = vmatprep.subr.bf16.mxu0 0
        %1449 = vmatpush1.bf16.msra.mxu0 %v1283
        %1450 = vmatprep.subr.bf16.mxu0 0
        %1451 = vmatpush1.bf16.msra.mxu0 %v1286
        %1452 = vmatprep.subr.bf16.mxu0 0
        %1453 = vmatpush1.bf16.msra.mxu0 %v1289
        %1454 = vmatprep.subr.bf16.mxu0 0
        %1455 = vmatpush1.bf16.msra.mxu0 %v1292
        %1456 = vmatprep.subr.bf16.mxu0 0
        %1457 = vmatpush1.bf16.msra.mxu0 %v1295
        %1458 = vmatprep.subr.bf16.mxu0 0
        %1459 = vmatpush1.bf16.msra.mxu0 %v1298
        %1460 = vmatprep.subr.bf16.mxu0 0
        %1461 = vmatpush1.bf16.msra.mxu0 %v1301
        %1462 = vmatprep.subr.bf16.mxu0 0
        %1463 = vmatpush1.bf16.msra.mxu0 %v1304
        %1464 = vmatprep.subr.bf16.mxu0 0
        %1465 = vmatpush1.bf16.msra.mxu0 %v1307
        %1466 = vmatprep.subr.bf16.mxu0 0
        %1467 = vmatpush1.bf16.msra.mxu0 %v1310
        %1468 = vmatprep.subr.bf16.mxu0 0
        %1469 = vmatpush1.bf16.msra.mxu0 %v1313
        %1470 = vmatprep.subr.bf16.mxu0 0
        %1471 = vmatpush1.bf16.msra.mxu0 %v1316
        %1472 = vmatprep.mubr.bf16.mxu0 %v1346
        %1473 = vmatmul.mubr.bf16.gmra.mrb[0].mxu0 %v1345
        %v1474 = vpop.f32.mrb[0].mxu0
        %v1475 = vadd.f32 %v1328, %v1474
        %v1476 = vpop.f32.mrb[0].mxu0
        %v1477 = vpop.f32.mrb[0].mxu0
        %v1478 = vadd.f32 %v1333, %v1477
        %v1479 = vpop.f32.mrb[0].mxu0
        %1480 = vdwg.mxu0
        %1481 = vmatprep.subr.bf16.mxu0 0
        %1482 = vmatpush1.bf16.msra.mxu0 %v1319
        %1483 = vmatprep.subr.bf16.mxu0 0
        %1484 = vmatpush1.bf16.msra.mxu0 %v1322
        %1485 = vmatprep.subr.bf16.mxu0 0
        %1486 = vmatpush1.bf16.msra.mxu0 0
        %1487 = vmatprep.subr.bf16.mxu0 0
        %1488 = vmatpush1.bf16.msra.mxu0 0
        %1489 = vmatprep.subr.bf16.mxu0 0
        %1490 = vmatpush1.bf16.msra.mxu0 0
        %1491 = vmatprep.subr.bf16.mxu0 0
        %1492 = vmatpush1.bf16.msra.mxu0 0
        %1493 = vmatprep.subr.bf16.mxu0 0
        %1494 = vmatpush1.bf16.msra.mxu0 0
        %1495 = vmatprep.subr.bf16.mxu0 0
        %1496 = vmatpush1.bf16.msra.mxu0 0
        %1497 = vmatprep.subr.bf16.mxu0 0
        %1498 = vmatpush1.bf16.msra.mxu0 0
        %1499 = vmatprep.subr.bf16.mxu0 0
        %1500 = vmatpush1.bf16.msra.mxu0 0
        %1501 = vmatprep.subr.bf16.mxu0 0
        %1502 = vmatpush1.bf16.msra.mxu0 0
        %1503 = vmatprep.subr.bf16.mxu0 0
        %1504 = vmatpush1.bf16.msra.mxu0 0
        %1505 = vmatprep.subr.bf16.mxu0 0
        %1506 = vmatpush1.bf16.msra.mxu0 0
        %1507 = vmatprep.subr.bf16.mxu0 0
        %1508 = vmatpush1.bf16.msra.mxu0 0
        %1509 = vmatprep.subr.bf16.mxu0 0
        %1510 = vmatpush1.bf16.msra.mxu0 0
        %1511 = vmatprep.subr.bf16.mxu0 0
        %1512 = vmatpush1.bf16.msra.mxu0 0
        %1513 = vmatprep.mubr.bf16.mxu0 0
        %1514 = vmatmul.mubr.bf16.gmra.mrb[0].mxu0 %v1352
        %v1515 = vpop.f32.mrb[0].mxu0
        %v1516 = vadd.f32 %v1475, %v1515
        %v1517 = vpop.f32.mrb[0].mxu0
        %v1518 = vpop.f32.mrb[0].mxu0
        %v1519 = vadd.f32 %v1478, %v1518
        %v1520 = vpop.f32.mrb[0].mxu0
        %1521 = vdwg.mxu0
        %vm1522 = vcmp.gt.f32.partialorder %v1432, 0.0
        %vm1523 = vcmp.gt.f32.partialorder %v1434, 0.0
        %vm1524 = vcmp.gt.f32.partialorder %v1516, 0.0
        %vm1525 = vcmp.gt.f32.partialorder %v1436, 0.0
        %vm1526 = vcmp.gt.f32.partialorder %v1438, 0.0
        %vm1527 = vcmp.gt.f32.partialorder %v1519, 0.0
        %v1528 = vmul.f32 %v1432, 0.1
        %v1529 = vmul.f32 %v1434, 0.1
        %v1530 = vmul.f32 %v1516, 0.1
        %v1531 = vmul.f32 %v1436, 0.1
        %v1532 = vmul.f32 %v1438, 0.1
        %v1533 = vmul.f32 %v1519, 0.1
        %v1534 = vsel %vm1522, %v1432, %v1528
        %v1535 = vsel %vm1523, %v1434, %v1529
        %v1536 = vsel %vm1524, %v1516, %v1530
        %v1537 = vsel %vm1525, %v1436, %v1531
        %v1538 = vsel %vm1526, %v1438, %v1532
        %v1539 = vsel %vm1527, %v1519, %v1533
        %v1540 = vmul.f32 %v1534, %v845
        %v1541 = vmul.f32 %v1535, %v849
        %v1542 = vmul.f32 %v1536, %v853
        %v1543 = vmul.f32 %v1537, %v845
        %v1544 = vmul.f32 %v1538, %v849
        %v1545 = vmul.f32 %v1539, %v853
        %1546 = vrot.lane.b32.xlu0 %v1540, 19
        %v1547 = vpop.permute.xlu0 %1546
        %1548 = vrot.lane.b32.xlu0 %v1543, 19
        %v1549 = vpop.permute.xlu0 %1548
        %1550 = vrot.lane.b32.xlu0 %v1541, 19
        %v1551 = vpop.permute.xlu0 %1550
        %1552 = vrot.lane.b32.xlu0 %v1544, 19
        %v1553 = vpop.permute.xlu0 %1552
        %1554 = vrot.lane.b32.xlu0 %v1542, 19
        %v1555 = vpop.permute.xlu0 %1554
        %1556 = vrot.lane.b32.xlu0 %v1545, 19
        %v1557 = vpop.permute.xlu0 %1556
        %v1558 = vsel %vm349, %v1551, %v1555
        %v1559 = vsel %vm349, %v1553, %v1557
        %v1560 = vsel %vm349, %v1547, %v1551
        %v1561 = vsel %vm349, %v1549, %v1553
        %v1562 = vsel %vm349, %v1555, %v1547
        %v1563 = vsel %vm349, %v1557, %v1549
        %v1564 = vpack.c.bf16 %v1563, %v1562
        %v1565 = vpack.c.bf16 %v1561, %v1560
        %v1566 = vpack.c.bf16 %v1559, %v1558
        %1567 = vst [vmem:[#allocation4] sm:$0xff] %v1564
        %1568 = vst [vmem:[#allocation4 + $0x8] sm:$0xff] %v1565
        %1569 = vst [vmem:[#allocation4 + $0x10] sm:$0xff] %v1566
        %1570 = vrot.lane.b32.xlu0 %v1540, 18
        %v1571 = vpop.permute.xlu0 %1570
        %1572 = vrot.lane.b32.xlu0 %v1543, 18
        %v1573 = vpop.permute.xlu0 %1572
        %1574 = vrot.lane.b32.xlu0 %v1541, 18
        %v1575 = vpop.permute.xlu0 %1574
        %1576 = vrot.lane.b32.xlu0 %v1544, 18
        %v1577 = vpop.permute.xlu0 %1576
        %1578 = vrot.lane.b32.xlu0 %v1542, 18
        %v1579 = vpop.permute.xlu0 %1578
        %1580 = vrot.lane.b32.xlu0 %v1545, 18
        %v1581 = vpop.permute.xlu0 %1580
        %v1582 = vsel %vm374, %v1575, %v1579
        %v1583 = vsel %vm374, %v1577, %v1581
        %v1584 = vsel %vm374, %v1571, %v1575
        %v1585 = vsel %vm374, %v1573, %v1577
        %v1586 = vsel %vm374, %v1579, %v1571
        %v1587 = vsel %vm374, %v1581, %v1573
        %v1588 = vpack.c.bf16 %v1587, %v1586
        %v1589 = vpack.c.bf16 %v1585, %v1584
        %v1590 = vpack.c.bf16 %v1583, %v1582
        %1591 = vst [vmem:[#allocation4 + $0x18] sm:$0xff] %v1588
        %1592 = vst [vmem:[#allocation4 + $0x20] sm:$0xff] %v1589
        %1593 = vst [vmem:[#allocation4 + $0x28] sm:$0xff] %v1590
        %1594 = vrot.lane.b32.xlu0 %v1540, 17
        %v1595 = vpop.permute.xlu0 %1594
        %1596 = vrot.lane.b32.xlu0 %v1543, 17
        %v1597 = vpop.permute.xlu0 %1596
        %1598 = vrot.lane.b32.xlu0 %v1541, 17
        %v1599 = vpop.permute.xlu0 %1598
        %1600 = vrot.lane.b32.xlu0 %v1544, 17
        %v1601 = vpop.permute.xlu0 %1600
        %1602 = vrot.lane.b32.xlu0 %v1542, 17
        %v1603 = vpop.permute.xlu0 %1602
        %1604 = vrot.lane.b32.xlu0 %v1545, 17
        %v1605 = vpop.permute.xlu0 %1604
        %v1606 = vsel %vm399, %v1599, %v1603
        %v1607 = vsel %vm399, %v1601, %v1605
        %v1608 = vsel %vm399, %v1595, %v1599
        %v1609 = vsel %vm399, %v1597, %v1601
        %v1610 = vsel %vm399, %v1603, %v1595
        %v1611 = vsel %vm399, %v1605, %v1597
        %v1612 = vpack.c.bf16 %v1611, %v1610
        %v1613 = vpack.c.bf16 %v1609, %v1608
        %v1614 = vpack.c.bf16 %v1607, %v1606
        %1615 = vst [vmem:[#allocation4 + $0x30] sm:$0xff] %v1612
        %1616 = vst [vmem:[#allocation4 + $0x38] sm:$0xff] %v1613
        %1617 = vst [vmem:[#allocation4 + $0x40] sm:$0xff] %v1614
        %1618 = vrot.lane.b32.xlu0 %v1540, 1
        %v1619 = vpop.permute.xlu0 %1618
        %1620 = vrot.lane.b32.xlu0 %v1543, 1
        %v1621 = vpop.permute.xlu0 %1620
        %1622 = vrot.lane.b32.xlu0 %v1541, 1
        %v1623 = vpop.permute.xlu0 %1622
        %1624 = vrot.lane.b32.xlu0 %v1544, 1
        %v1625 = vpop.permute.xlu0 %1624
        %1626 = vrot.lane.b32.xlu0 %v1542, 1
        %v1627 = vpop.permute.xlu0 %1626
        %1628 = vrot.lane.b32.xlu0 %v1545, 1
        %v1629 = vpop.permute.xlu0 %1628
        %v1630 = vsel %vm424, %v1623, %v1627
        %v1631 = vsel %vm424, %v1625, %v1629
        %v1632 = vsel %vm424, %v1619, %v1623
        %v1633 = vsel %vm424, %v1621, %v1625
        %v1634 = vsel %vm424, %v1627, %v1619
        %v1635 = vsel %vm424, %v1629, %v1621
        %v1636 = vpack.c.bf16 %v1635, %v1634
        %v1637 = vpack.c.bf16 %v1633, %v1632
        %v1638 = vpack.c.bf16 %v1631, %v1630
        %1639 = vst [vmem:[#allocation4 + $0x48] sm:$0xff] %v1636
        %1640 = vst [vmem:[#allocation4 + $0x50] sm:$0xff] %v1637
        %1641 = vst [vmem:[#allocation4 + $0x58] sm:$0xff] %v1638
        %v1642 = vpack.c.bf16 %v1543, %v1540
        %v1643 = vpack.c.bf16 %v1544, %v1541
        %v1644 = vpack.c.bf16 %v1545, %v1542
        %1645 = vst [vmem:[#allocation4 + $0x60] sm:$0xff] %v1642
        %1646 = vst [vmem:[#allocation4 + $0x68] sm:$0xff] %v1643
        %1647 = vst [vmem:[#allocation4 + $0x70] sm:$0xff] %v1644
        %1648 = vrot.lane.b32.xlu0 %v1540, 127
        %v1649 = vpop.permute.xlu0 %1648
        %1650 = vrot.lane.b32.xlu0 %v1543, 127
        %v1651 = vpop.permute.xlu0 %1650
        %1652 = vrot.lane.b32.xlu0 %v1541, 127
        %v1653 = vpop.permute.xlu0 %1652
        %1654 = vrot.lane.b32.xlu0 %v1544, 127
        %v1655 = vpop.permute.xlu0 %1654
        %1656 = vrot.lane.b32.xlu0 %v1542, 127
        %v1657 = vpop.permute.xlu0 %1656
        %1658 = vrot.lane.b32.xlu0 %v1545, 127
        %v1659 = vpop.permute.xlu0 %1658
        %v1660 = vsel %vm464, %v1653, %v1657
        %v1661 = vsel %vm464, %v1655, %v1659
        %v1662 = vsel %vm464, %v1649, %v1653
        %v1663 = vsel %vm464, %v1651, %v1655
        %v1664 = vsel %vm464, %v1657, %v1649
        %v1665 = vsel %vm464, %v1659, %v1651
        %v1666 = vpack.c.bf16 %v1663, %v1662
        %v1667 = vpack.c.bf16 %v1661, %v1660
        %v1668 = vpack.c.bf16 %v1665, %v1664
        %1669 = vst [vmem:[#allocation4 + $0x78] sm:$0xff] %v1666
        %1670 = vst [vmem:[#allocation4 + $0x80] sm:$0xff] %v1667
        %1671 = vst [vmem:[#allocation4 + $0x88] sm:$0xff] %v1668
        %1672 = vrot.lane.b32.xlu0 %v1540, 111
        %v1673 = vpop.permute.xlu0 %1672
        %1674 = vrot.lane.b32.xlu0 %v1543, 111
        %v1675 = vpop.permute.xlu0 %1674
        %1676 = vrot.lane.b32.xlu0 %v1541, 111
        %v1677 = vpop.permute.xlu0 %1676
        %1678 = vrot.lane.b32.xlu0 %v1544, 111
        %v1679 = vpop.permute.xlu0 %1678
        %1680 = vrot.lane.b32.xlu0 %v1542, 111
        %v1681 = vpop.permute.xlu0 %1680
        %1682 = vrot.lane.b32.xlu0 %v1545, 111
        %v1683 = vpop.permute.xlu0 %1682
        %v1684 = vsel %vm489, %v1677, %v1681
        %v1685 = vsel %vm489, %v1679, %v1683
        %v1686 = vsel %vm489, %v1673, %v1677
        %v1687 = vsel %vm489, %v1675, %v1679
        %v1688 = vsel %vm489, %v1681, %v1673
        %v1689 = vsel %vm489, %v1683, %v1675
        %v1690 = vpack.c.bf16 %v1687, %v1686
        %v1691 = vpack.c.bf16 %v1685, %v1684
        %v1692 = vpack.c.bf16 %v1689, %v1688
        %1693 = vst [vmem:[#allocation4 + $0x90] sm:$0xff] %v1690
        %1694 = vst [vmem:[#allocation4 + $0x98] sm:$0xff] %v1691
        %1695 = vst [vmem:[#allocation4 + $0xa0] sm:$0xff] %v1692
        %1696 = vrot.lane.b32.xlu0 %v1540, 110
        %v1697 = vpop.permute.xlu0 %1696
        %1698 = vrot.lane.b32.xlu0 %v1543, 110
        %v1699 = vpop.permute.xlu0 %1698
        %1700 = vrot.lane.b32.xlu0 %v1541, 110
        %v1701 = vpop.permute.xlu0 %1700
        %1702 = vrot.lane.b32.xlu0 %v1544, 110
        %v1703 = vpop.permute.xlu0 %1702
        %1704 = vrot.lane.b32.xlu0 %v1542, 110
        %v1705 = vpop.permute.xlu0 %1704
        %1706 = vrot.lane.b32.xlu0 %v1545, 110
        %v1707 = vpop.permute.xlu0 %1706
        %v1708 = vsel %vm514, %v1701, %v1705
        %v1709 = vsel %vm514, %v1703, %v1707
        %v1710 = vsel %vm514, %v1697, %v1701
        %v1711 = vsel %vm514, %v1699, %v1703
        %v1712 = vsel %vm514, %v1705, %v1697
        %v1713 = vsel %vm514, %v1707, %v1699
        %v1714 = vpack.c.bf16 %v1711, %v1710
        %v1715 = vpack.c.bf16 %v1709, %v1708
        %v1716 = vpack.c.bf16 %v1713, %v1712
        %1717 = vst [vmem:[#allocation4 + $0xa8] sm:$0xff] %v1714
        %1718 = vst [vmem:[#allocation4 + $0xb0] sm:$0xff] %v1715
        %1719 = vst [vmem:[#allocation4 + $0xb8] sm:$0xff] %v1716
        %1720 = vrot.lane.b32.xlu0 %v1540, 109
        %v1721 = vpop.permute.xlu0 %1720
        %1722 = vrot.lane.b32.xlu0 %v1543, 109
        %v1723 = vpop.permute.xlu0 %1722
        %1724 = vrot.lane.b32.xlu0 %v1541, 109
        %v1725 = vpop.permute.xlu0 %1724
        %1726 = vrot.lane.b32.xlu0 %v1544, 109
        %v1727 = vpop.permute.xlu0 %1726
        %1728 = vrot.lane.b32.xlu0 %v1542, 109
        %v1729 = vpop.permute.xlu0 %1728
        %1730 = vrot.lane.b32.xlu0 %v1545, 109
        %v1731 = vpop.permute.xlu0 %1730
        %v1732 = vsel %vm539, %v1725, %v1729
        %v1733 = vsel %vm539, %v1727, %v1731
        %v1734 = vsel %vm539, %v1721, %v1725
        %v1735 = vsel %vm539, %v1723, %v1727
        %v1736 = vsel %vm539, %v1729, %v1721
        %v1737 = vsel %vm539, %v1731, %v1723
        %v1738 = vpack.c.bf16 %v1735, %v1734
        %v1739 = vpack.c.bf16 %v1733, %v1732
        %v1740 = vpack.c.bf16 %v1737, %v1736
        %1741 = vst [vmem:[#allocation4 + $0xc0] sm:$0xff] %v1738
        %1742 = vst [vmem:[#allocation4 + $0xc8] sm:$0xff] %v1739
        %1743 = vst [vmem:[#allocation4 + $0xd0] sm:$0xff] %v1740
        %v1744 = vld [vmem:[%s6] sm:$0xf]
        %v1745 = vld [vmem:[#allocation4] sm:$0xff]
        %v1746 = vld [vmem:[#allocation4 + $0x8] sm:$0xff]
        %v1747 = vld [vmem:[#allocation4 + $0x10] sm:$0xff]
        %v1748 = vld [vmem:[#allocation4 + $0x18] sm:$0xff]
        %v1749 = vld [vmem:[#allocation4 + $0x20] sm:$0xff]
        %v1750 = vld [vmem:[#allocation4 + $0x28] sm:$0xff]
        %v1751 = vld [vmem:[#allocation4 + $0x30] sm:$0xff]
        %v1752 = vld [vmem:[#allocation4 + $0x38] sm:$0xff]
        %v1753 = vld [vmem:[#allocation4 + $0x40] sm:$0xff]
        %v1754 = vld [vmem:[#allocation4 + $0x48] sm:$0xff]
        %v1755 = vld [vmem:[#allocation4 + $0x50] sm:$0xff]
        %v1756 = vld [vmem:[#allocation4 + $0x58] sm:$0xff]
        %v1757 = vld [vmem:[#allocation4 + $0x60] sm:$0xff]
        %v1758 = vld [vmem:[#allocation4 + $0x68] sm:$0xff]
        %v1759 = vld [vmem:[#allocation4 + $0x70] sm:$0xff]
        %v1760 = vld [vmem:[#allocation4 + $0x78] sm:$0xff]
        %v1761 = vld [vmem:[#allocation4 + $0x80] sm:$0xff]
        %v1762 = vld [vmem:[#allocation4 + $0x88] sm:$0xff]
        %v1763 = vld [vmem:[#allocation4 + $0x90] sm:$0xff]
        %v1764 = vld [vmem:[#allocation4 + $0x98] sm:$0xff]
        %v1765 = vld [vmem:[#allocation4 + $0xa0] sm:$0xff]
        %v1766 = vld [vmem:[#allocation4 + $0xa8] sm:$0xff]
        %v1767 = vld [vmem:[#allocation4 + $0xb0] sm:$0xff]
        %v1768 = vld [vmem:[#allocation4 + $0xb8] sm:$0xff]
        %v1769 = vld [vmem:[#allocation4 + $0xc0] sm:$0xff]
        %v1770 = vld [vmem:[#allocation4 + $0xc8] sm:$0xff]
        %v1771 = vld [vmem:[#allocation4 + $0xd0] sm:$0xff]
        %v1772 = vld [vmem:[%s7] sm:$0x7]
        %1774 = vset.pattern.permute.xlu0 0
        %1775 = vperm.xlu0 %1774, %v1772
        %v1776 = vpop.permute.xlu0 %1775
        %v1780 = vunpack.c.l.s4 1983009808
        %v1781 = vunpack.c.0.s8 %v1780
        %v1782 = vlaneseq
        %v1783 = vshrl.u32 %v1782, 7
        %v1784 = vsub.s32 %v1781, %v1783
        %v1785 = vrot.slane %v1744, %v1784
        %v1786 = vcombine.high %v1785, %v1785
        %vm1788 = vcmask 130048
        %v1790 = vsel %vm1788, %v1786, 0
        %1792 = vmatprep.subr.bf16.mxu0 %v1746
        %1793 = vmatpush1.bf16.msra.mxu0 %v1745
        %1794 = vmatprep.subr.bf16.mxu0 %v1749
        %1795 = vmatpush1.bf16.msra.mxu0 %v1748
        %1796 = vmatprep.subr.bf16.mxu0 %v1752
        %1797 = vmatpush1.bf16.msra.mxu0 %v1751
        %1798 = vmatprep.subr.bf16.mxu0 %v1755
        %1799 = vmatpush1.bf16.msra.mxu0 %v1754
        %1800 = vmatprep.subr.bf16.mxu0 %v1758
        %1801 = vmatpush1.bf16.msra.mxu0 %v1757
        %1802 = vmatprep.subr.bf16.mxu0 %v1761
        %1803 = vmatpush1.bf16.msra.mxu0 %v1760
        %1804 = vmatprep.subr.bf16.mxu0 %v1764
        %1805 = vmatpush1.bf16.msra.mxu0 %v1763
        %1806 = vmatprep.subr.bf16.mxu0 %v1767
        %1807 = vmatpush1.bf16.msra.mxu0 %v1766
        %1808 = vmatprep.subr.bf16.mxu0 %v1770
        %1809 = vmatpush1.bf16.msra.mxu0 %v1769
        %1810 = vmatprep.subr.bf16.mxu0 0
        %1811 = vmatpush1.bf16.msra.mxu0 0
        %1812 = vmatprep.subr.bf16.mxu0 0
        %1813 = vmatpush1.bf16.msra.mxu0 0
        %1814 = vmatprep.subr.bf16.mxu0 0
        %1815 = vmatpush1.bf16.msra.mxu0 0
        %1816 = vmatprep.subr.bf16.mxu0 0
        %1817 = vmatpush1.bf16.msra.mxu0 0
        %1818 = vmatprep.subr.bf16.mxu0 0
        %1819 = vmatpush1.bf16.msra.mxu0 0
        %1820 = vmatprep.subr.bf16.mxu0 0
        %1821 = vmatpush1.bf16.msra.mxu0 0
        %1822 = vmatprep.subr.bf16.mxu0 0
        %1823 = vmatpush1.bf16.msra.mxu0 0
        %1824 = vmatprep.mubr.bf16.mxu0 %v1790
        %1825 = vmatmul.mubr.bf16.gmra.mrb[0].mxu0 %v1785
        %v1826 = vpop.f32.mrb[0].mxu0
        %v1827 = vadd.f32 %v1776, %v1826
        %v1828 = vpop.f32.mrb[0].mxu0
        %v1829 = vadd.f32 %v1776, %v1828
        %v1830 = vpop.f32.mrb[0].mxu0
        %v1831 = vpop.f32.mrb[0].mxu0
        %1832 = vdwg.mxu0
        %1833 = vmatprep.subr.bf16.mxu0 0
        %1834 = vmatpush1.bf16.msra.mxu0 %v1747
        %1835 = vmatprep.subr.bf16.mxu0 0
        %1836 = vmatpush1.bf16.msra.mxu0 %v1750
        %1837 = vmatprep.subr.bf16.mxu0 0
        %1838 = vmatpush1.bf16.msra.mxu0 %v1753
        %1839 = vmatprep.subr.bf16.mxu0 0
        %1840 = vmatpush1.bf16.msra.mxu0 %v1756
        %1841 = vmatprep.subr.bf16.mxu0 0
        %1842 = vmatpush1.bf16.msra.mxu0 %v1759
        %1843 = vmatprep.subr.bf16.mxu0 0
        %1844 = vmatpush1.bf16.msra.mxu0 %v1762
        %1845 = vmatprep.subr.bf16.mxu0 0
        %1846 = vmatpush1.bf16.msra.mxu0 %v1765
        %1847 = vmatprep.subr.bf16.mxu0 0
        %1848 = vmatpush1.bf16.msra.mxu0 %v1768
        %1849 = vmatprep.subr.bf16.mxu0 0
        %1850 = vmatpush1.bf16.msra.mxu0 %v1771
        %1851 = vmatprep.subr.bf16.mxu0 0
        %1852 = vmatpush1.bf16.msra.mxu0 0
        %1853 = vmatprep.subr.bf16.mxu0 0
        %1854 = vmatpush1.bf16.msra.mxu0 0
        %1855 = vmatprep.subr.bf16.mxu0 0
        %1856 = vmatpush1.bf16.msra.mxu0 0
        %1857 = vmatprep.subr.bf16.mxu0 0
        %1858 = vmatpush1.bf16.msra.mxu0 0
        %1859 = vmatprep.subr.bf16.mxu0 0
        %1860 = vmatpush1.bf16.msra.mxu0 0
        %1861 = vmatprep.subr.bf16.mxu0 0
        %1862 = vmatpush1.bf16.msra.mxu0 0
        %1863 = vmatprep.subr.bf16.mxu0 0
        %1864 = vmatpush1.bf16.msra.mxu0 0
        %1865 = vmatprep.mubr.bf16.mxu0 %v1790
        %1866 = vmatmul.mubr.bf16.gmra.mrb[0].mxu0 %v1785
        %v1867 = vpop.f32.mrb[0].mxu0
        %v1868 = vadd.f32 %v1776, %v1867
        %v1869 = vpop.f32.mrb[0].mxu0
        %v1870 = vpop.f32.mrb[0].mxu0
        %v1871 = vpop.f32.mrb[0].mxu0
        %1872 = vdwg.mxu0
        %v1875 = vcombine.low %v1827, %v1829
        %1877 = vst [vmem:[%s335] sm:$0x77] %v1875
        %1878 = vst [vmem:[%s335 + $0x8] sm:$0x7] %v1868
        %p1879 = scmp.lt.s32.totalorder %s21, 1
        %s1880 = scalar_select %p1879, %s21, 1
        %s1881 = smul.addr %s1880, 3
        %s1882 = smul.addr %s1881, 4
        %s1883 = scalar_lea.vmem %s8, %s1882
        // Predicated region
        $region61: #{tpu_custom_call.1} parent=51 // pred_check
          %p1884 = pneg %p212
        $region62: #{tpu_custom_call.1} parent=51 // pred_check_branch
          %1886 = sbr.rel (%p1884) target = $region64
        $region63: #{tpu_custom_call.1} parent=51 // pred_region
          _
        $region64: #{tpu_custom_call.1} parent=51 // pred_fallthru
          _
      $region52: #{tpu_custom_call.1} parent=5 // pred_fallthru
        _
      %p1887 = scmp.le.s32.totalorder 2, %s16
      // Predicated region
      $region65: #{tpu_custom_call.1} parent=5 // pred_check
        %p1888 = pneg %p1887
      $region66: #{tpu_custom_call.1} parent=5 // pred_check_branch
        %1890 = sbr.rel (%p1888) target = $region68
      $region67: #{tpu_custom_call.1} parent=5 // pred_region
        %s1891 = ssub.s32 %s16, 2
        // Predicated region
        $region69: #{tpu_custom_call.1} parent=67 // pred_check
          %p1892 = pneg %p218
        $region70: #{tpu_custom_call.1} parent=67 // pred_check_branch
          %1894 = sbr.rel (%p1892) target = $region72
        $region71: #{tpu_custom_call.1} parent=67 // pred_region
          %p1895 = scmp.lt.s32.totalorder %s22, 1
          %s1896 = scalar_select %p1895, %s22, 1
          %s1897 = smul.addr %s1896, 3
          %s1898 = smul.addr %s1897, 4
          %s1899 = scalar_lea.vmem %s8, %s1898
        $region72: #{tpu_custom_call.1} parent=67 // pred_fallthru
          _
      $region68: #{tpu_custom_call.1} parent=5 // pred_fallthru
        _
    $region6: #{tpu_custom_call.1} parent=1 // loop_footer
      %s20 = sadd.s32 1, %s16
    $region7: #{tpu_custom_call.1} parent=1 // loop_footer_branch
      %15 = sbr.rel target = $region3
    $region8: #{tpu_custom_call.1} parent=1 // loop_exit
      _
    %1900 = vsyncpa [#allocation6], 1
    %s1901 = scalar_lea.sflag [#allocation6], 1
    %1902 = vsyncpa %s1901, 1
    %1903 = vsyncpa [#allocation8], 1

</llo_original>
